<compile_context>
chip_gen: v5e
topology: v5e:2x2
jax: 0.10.0
libtpu: 0.0.40
codegen_flags: <defaults>
</compile_context>

<pallas_src>
import jax
import jax.numpy as jnp
from jax.experimental import pallas as pl
from jax.experimental.pallas import tpu as pltpu  # noqa: F401  (TPU backend)

LANES = 128  # pad every GEMM output-channel axis to the full lane width


# ---------------------------------------------------------------------------
# Pallas kernels
# ---------------------------------------------------------------------------
def _conv_pool_relu_kernel(p_ref, w_ref, b_ref, o_ref):
    """Fused valid-conv (as GEMM) + bias + 2x2 maxpool + ReLU.

    p_ref: (P, M, K)  P stacked pool-window im2col slabs (P = pool*pool)
    w_ref: (K, 128)   conv weight, Cout zero-padded to 128 lanes
    b_ref: (1, 128)   bias, zero-padded
    o_ref: (M, 128)   pooled+ReLU'd activation (lane-dense store)

    max over the P pool windows commutes with the constant bias add and with
    ReLU, so the pooled activation is a running max over the P GEMMs.
    """
    z = jnp.dot(p_ref[0], w_ref[...], preferred_element_type=jnp.float32)
    for k in range(1, p_ref.shape[0]):
        z = jnp.maximum(
            z, jnp.dot(p_ref[k], w_ref[...], preferred_element_type=jnp.float32))
    o_ref[...] = jnp.maximum(z + b_ref[...], 0.0)


def _head_kernel(h_ref, w1_ref, b1_ref, w2_ref, b2_ref, w3_ref, b3_ref, o_ref):
    """fc1+ReLU -> fc2+ReLU -> fc3+tanh, fully VMEM resident.

    Hidden/output dims are zero-padded to 128 lanes; pad lanes stay exactly
    zero through ReLU / tanh and are sliced off outside the kernel.
    """
    x = jnp.dot(h_ref[...], w1_ref[...], preferred_element_type=jnp.float32)
    x = jnp.maximum(x + b1_ref[...], 0.0)
    x = jnp.dot(x, w2_ref[...], preferred_element_type=jnp.float32)
    x = jnp.maximum(x + b2_ref[...], 0.0)
    x = jnp.dot(x, w3_ref[...], preferred_element_type=jnp.float32)
    o_ref[...] = jnp.tanh(x + b3_ref[...])


# ---------------------------------------------------------------------------
# Glue: pool-window im2col, padded weight packing, orchestration
# ---------------------------------------------------------------------------
def _pool_window_patches(x_nhwc, ksize, pool):
    """Build (pool*pool, N*Hp*Wp, ksize*ksize*C) im2col slabs, one per position
    inside the pooling window, so conv + maxpool becomes a running max over
    pool*pool GEMMs inside one kernel."""
    N, H, W, C = x_nhwc.shape
    Ho, Wo = H - ksize + 1, W - ksize + 1          # valid conv output
    Hp, Wp = Ho // pool, Wo // pool                # pooled output
    slabs = []
    for dy in range(pool):
        for dx in range(pool):
            cols = []
            for i in range(ksize):
                for j in range(ksize):
                    sl = x_nhwc[:, dy + i: dy + i + pool * Hp: pool,
                                dx + j: dx + j + pool * Wp: pool, :]
                    cols.append(sl)                 # (N, Hp, Wp, C)
            p = jnp.stack(cols, axis=-2)            # (N, Hp, Wp, k*k, C)
            slabs.append(p.reshape(N * Hp * Wp, ksize * ksize * C))
    return jnp.stack(slabs, axis=0), Hp, Wp


def conv_pool_relu(x_nhwc, w_oihw, bias, pool=2):
    """torch: F.max_pool2d(F.relu(conv(x) + b), pool) in ONE pallas_call."""
    Cout, Cin, kh, kw = w_oihw.shape
    N = x_nhwc.shape[0]
    patches, Hp, Wp = _pool_window_patches(x_nhwc, kh, pool)
    K = kh * kw * Cin
    # weight rows ordered (i, j, cin) to match the patch feature ordering
    w_mat = jnp.transpose(w_oihw, (2, 3, 1, 0)).reshape(K, Cout)
    w_pad = jnp.zeros((K, LANES), jnp.float32).at[:, :Cout].set(w_mat)
    b_pad = jnp.zeros((1, LANES), jnp.float32).at[0, :Cout].set(bias)
    M = patches.shape[1]
    out = pl.pallas_call(
        _conv_pool_relu_kernel,
        out_shape=jax.ShapeDtypeStruct((M, LANES), jnp.float32),
    )(patches, w_pad, b_pad)
    # Drop the zero pad lanes; this slice fuses into the next XLA gather.
    return out[:, :Cout].reshape(N, Hp, Wp, Cout)


def _pad_fc(w_out_in, b, in_pad=None):
    """torch Linear (out,in) -> GEMM (in_pad, 128) + (1, 128), zero-padded."""
    out_d, in_d = w_out_in.shape
    rows = in_d if in_pad is None else in_pad
    wp = jnp.zeros((rows, LANES), jnp.float32).at[:in_d, :out_d].set(w_out_in.T)
    bp = jnp.zeros((1, LANES), jnp.float32).at[0, :out_d].set(b)
    return wp, bp


def lenet_forward(params, x_nchw):
    x = jnp.transpose(x_nchw, (0, 2, 3, 1)).astype(jnp.float32)   # NCHW -> NHWC
    x = conv_pool_relu(x, params['conv1_w'], params['conv1_b'])   # (N, 14, 14, 6)
    x = conv_pool_relu(x, params['conv2_w'], params['conv2_b'])   # (N, 5, 5, 16)
    N = x.shape[0]
    h = x.reshape(N, -1)                                          # (N, 400) NHWC flatten

    w1p, b1p = _pad_fc(params['fc1_w'], params['fc1_b'])          # (400,128)
    w2p, b2p = _pad_fc(params['fc2_w'], params['fc2_b'], in_pad=LANES)
    w3p, b3p = _pad_fc(params['fc3_w'], params['fc3_b'], in_pad=LANES)

    out = pl.pallas_call(
        _head_kernel,
        out_shape=jax.ShapeDtypeStruct((N, LANES), jnp.float32),
    )(h, w1p, b1p, w2p, b2p, w3p, b3p)
    return out[:, :1]                                             # (N, 1)


# ---------------------------------------------------------------------------
# Deterministic parameter init (PyTorch default-style uniform, right shapes)
# ---------------------------------------------------------------------------
def init_params(key, n_channels_input=1):
    ks = jax.random.split(key, 10)

    def u(k, shape, fan_in):
        bound = 1.0 / (fan_in ** 0.5)
        return jax.random.uniform(k, shape, jnp.float32, -bound, bound)

    p = {}
    p['conv1_w'] = u(ks[0], (6, n_channels_input, 5, 5), n_channels_input * 25)
    p['conv1_b'] = u(ks[1], (6,), n_channels_input * 25)
    p['conv2_w'] = u(ks[2], (16, 6, 5, 5), 6 * 25)
    p['conv2_b'] = u(ks[3], (16,), 6 * 25)
    # fc1 is defined over the NHWC flatten order (h, w, c) of the 16x5x5 map.
    p['fc1_w'] = u(ks[4], (120, 16 * 5 * 5), 16 * 5 * 5)
    p['fc1_b'] = u(ks[5], (120,), 16 * 5 * 5)
    p['fc2_w'] = u(ks[6], (84, 120), 120)
    p['fc2_b'] = u(ks[7], (84,), 120)
    p['fc3_w'] = u(ks[8], (1, 84), 84)
    p['fc3_b'] = u(ks[9], (1,), 84)
    return p


if __name__ == "__main__":
    key = jax.random.PRNGKey(0)
    pkey, xkey = jax.random.split(key)
    params = init_params(pkey, n_channels_input=1)
    # fc1 = Linear(16*5*5, 120) implies 32x32 inputs with 1 channel.
    x = jax.random.normal(xkey, (2, 1, 32, 32), jnp.float32)
    fwd = jax.jit(lambda inp: lenet_forward(params, inp))
    out = jax.block_until_ready(fwd(x))
    assert out.shape == (2, 1) and out.dtype == jnp.float32
    assert bool(jnp.all(jnp.isfinite(out)))
    assert bool(jnp.all(jnp.abs(out) <= 1.0))      # tanh range
    print("KERNEL_OK")
</pallas_src>

<mosaic_0001>
module attributes {stable_mosaic.version = 11 : i64} {
  func.func @_conv_pool_relu_kernel(%arg0: memref<4x392x25xf32, #tpu.memory_space<vmem>>, %arg1: memref<25x128xf32, #tpu.memory_space<vmem>>, %arg2: memref<1x128xf32, #tpu.memory_space<vmem>>, %arg3: memref<392x128xf32, #tpu.memory_space<vmem>>) attributes {dimension_semantics = [], scalar_prefetch = 0 : i64, scratch_operands = 0 : i64, tpu.core_type = #tpu.core_type<tc>} {
    %c0 = arith.constant 0 : index
    %c0_0 = arith.constant 0 : index
    %c0_1 = arith.constant 0 : index
    %0 = vector.load %arg0[%c0, %c0_0, %c0_1] : memref<4x392x25xf32, #tpu.memory_space<vmem>>, vector<1x392x25xf32>
    %1 = vector.shape_cast %0 : vector<1x392x25xf32> to vector<392x25xf32>
    %c0_2 = arith.constant 0 : index
    %c0_3 = arith.constant 0 : index
    %2 = vector.load %arg1[%c0_2, %c0_3] : memref<25x128xf32, #tpu.memory_space<vmem>>, vector<25x128xf32>
    %cst = arith.constant dense<0.000000e+00> : vector<392x128xf32>
    %3 = tpu.matmul %1, %2, %cst {dimension_numbers = #tpu.dot_dimension_numbers<[1], [0], [0], [1], [0, 0, 1, 1], [], []>} : vector<392x25xf32>, vector<25x128xf32>, vector<392x128xf32> -> vector<392x128xf32>
    %c1 = arith.constant 1 : index
    %c0_4 = arith.constant 0 : index
    %c0_5 = arith.constant 0 : index
    %4 = vector.load %arg0[%c1, %c0_4, %c0_5] : memref<4x392x25xf32, #tpu.memory_space<vmem>>, vector<1x392x25xf32>
    %5 = vector.shape_cast %4 : vector<1x392x25xf32> to vector<392x25xf32>
    %c0_6 = arith.constant 0 : index
    %c0_7 = arith.constant 0 : index
    %6 = vector.load %arg1[%c0_6, %c0_7] : memref<25x128xf32, #tpu.memory_space<vmem>>, vector<25x128xf32>
    %cst_8 = arith.constant dense<0.000000e+00> : vector<392x128xf32>
    %7 = tpu.matmul %5, %6, %cst_8 {dimension_numbers = #tpu.dot_dimension_numbers<[1], [0], [0], [1], [0, 0, 1, 1], [], []>} : vector<392x25xf32>, vector<25x128xf32>, vector<392x128xf32> -> vector<392x128xf32>
    %8 = arith.maximumf %3, %7 : vector<392x128xf32>
    %c2 = arith.constant 2 : index
    %c0_9 = arith.constant 0 : index
    %c0_10 = arith.constant 0 : index
    %9 = vector.load %arg0[%c2, %c0_9, %c0_10] : memref<4x392x25xf32, #tpu.memory_space<vmem>>, vector<1x392x25xf32>
    %10 = vector.shape_cast %9 : vector<1x392x25xf32> to vector<392x25xf32>
    %c0_11 = arith.constant 0 : index
    %c0_12 = arith.constant 0 : index
    %11 = vector.load %arg1[%c0_11, %c0_12] : memref<25x128xf32, #tpu.memory_space<vmem>>, vector<25x128xf32>
    %cst_13 = arith.constant dense<0.000000e+00> : vector<392x128xf32>
    %12 = tpu.matmul %10, %11, %cst_13 {dimension_numbers = #tpu.dot_dimension_numbers<[1], [0], [0], [1], [0, 0, 1, 1], [], []>} : vector<392x25xf32>, vector<25x128xf32>, vector<392x128xf32> -> vector<392x128xf32>
    %13 = arith.maximumf %8, %12 : vector<392x128xf32>
    %c3 = arith.constant 3 : index
    %c0_14 = arith.constant 0 : index
    %c0_15 = arith.constant 0 : index
    %14 = vector.load %arg0[%c3, %c0_14, %c0_15] : memref<4x392x25xf32, #tpu.memory_space<vmem>>, vector<1x392x25xf32>
    %15 = vector.shape_cast %14 : vector<1x392x25xf32> to vector<392x25xf32>
    %c0_16 = arith.constant 0 : index
    %c0_17 = arith.constant 0 : index
    %16 = vector.load %arg1[%c0_16, %c0_17] : memref<25x128xf32, #tpu.memory_space<vmem>>, vector<25x128xf32>
    %cst_18 = arith.constant dense<0.000000e+00> : vector<392x128xf32>
    %17 = tpu.matmul %15, %16, %cst_18 {dimension_numbers = #tpu.dot_dimension_numbers<[1], [0], [0], [1], [0, 0, 1, 1], [], []>} : vector<392x25xf32>, vector<25x128xf32>, vector<392x128xf32> -> vector<392x128xf32>
    %18 = arith.maximumf %13, %17 : vector<392x128xf32>
    %c0_19 = arith.constant 0 : index
    %c0_20 = arith.constant 0 : index
    %19 = vector.load %arg2[%c0_19, %c0_20] : memref<1x128xf32, #tpu.memory_space<vmem>>, vector<1x128xf32>
    %20 = vector.broadcast %19 : vector<1x128xf32> to vector<392x128xf32>
    %21 = arith.addf %18, %20 : vector<392x128xf32>
    %cst_21 = arith.constant 0.000000e+00 : f32
    %22 = vector.broadcast %cst_21 : f32 to vector<392x128xf32>
    %23 = arith.maximumf %21, %22 : vector<392x128xf32>
    %c0_22 = arith.constant 0 : index
    %c0_23 = arith.constant 0 : index
    %24 = vector.load %arg3[%c0_22, %c0_23] : memref<392x128xf32, #tpu.memory_space<vmem>>, vector<392x128xf32>
    tpu.vector_store %arg3[%c0_22, %c0_23], %23 {strides = array<i32>} : memref<392x128xf32, #tpu.memory_space<vmem>>, vector<392x128xf32>,
    return
  }
}

module attributes {stable_mosaic.version = 11 : i64} {
  func.func @_conv_pool_relu_kernel(%arg0: memref<4x50x150xf32, #tpu.memory_space<vmem>>, %arg1: memref<150x128xf32, #tpu.memory_space<vmem>>, %arg2: memref<1x128xf32, #tpu.memory_space<vmem>>, %arg3: memref<50x128xf32, #tpu.memory_space<vmem>>) attributes {dimension_semantics = [], scalar_prefetch = 0 : i64, scratch_operands = 0 : i64, tpu.core_type = #tpu.core_type<tc>} {
    %c0 = arith.constant 0 : index
    %c0_0 = arith.constant 0 : index
    %c0_1 = arith.constant 0 : index
    %0 = vector.load %arg0[%c0, %c0_0, %c0_1] : memref<4x50x150xf32, #tpu.memory_space<vmem>>, vector<1x50x150xf32>
    %1 = vector.shape_cast %0 : vector<1x50x150xf32> to vector<50x150xf32>
    %c0_2 = arith.constant 0 : index
    %c0_3 = arith.constant 0 : index
    %2 = vector.load %arg1[%c0_2, %c0_3] : memref<150x128xf32, #tpu.memory_space<vmem>>, vector<150x128xf32>
    %cst = arith.constant dense<0.000000e+00> : vector<50x128xf32>
    %3 = tpu.matmul %1, %2, %cst {dimension_numbers = #tpu.dot_dimension_numbers<[1], [0], [0], [1], [0, 0, 1, 1], [], []>} : vector<50x150xf32>, vector<150x128xf32>, vector<50x128xf32> -> vector<50x128xf32>
    %c1 = arith.constant 1 : index
    %c0_4 = arith.constant 0 : index
    %c0_5 = arith.constant 0 : index
    %4 = vector.load %arg0[%c1, %c0_4, %c0_5] : memref<4x50x150xf32, #tpu.memory_space<vmem>>, vector<1x50x150xf32>
    %5 = vector.shape_cast %4 : vector<1x50x150xf32> to vector<50x150xf32>
    %c0_6 = arith.constant 0 : index
    %c0_7 = arith.constant 0 : index
    %6 = vector.load %arg1[%c0_6, %c0_7] : memref<150x128xf32, #tpu.memory_space<vmem>>, vector<150x128xf32>
    %cst_8 = arith.constant dense<0.000000e+00> : vector<50x128xf32>
    %7 = tpu.matmul %5, %6, %cst_8 {dimension_numbers = #tpu.dot_dimension_numbers<[1], [0], [0], [1], [0, 0, 1, 1], [], []>} : vector<50x150xf32>, vector<150x128xf32>, vector<50x128xf32> -> vector<50x128xf32>
    %8 = arith.maximumf %3, %7 : vector<50x128xf32>
    %c2 = arith.constant 2 : index
    %c0_9 = arith.constant 0 : index
    %c0_10 = arith.constant 0 : index
    %9 = vector.load %arg0[%c2, %c0_9, %c0_10] : memref<4x50x150xf32, #tpu.memory_space<vmem>>, vector<1x50x150xf32>
    %10 = vector.shape_cast %9 : vector<1x50x150xf32> to vector<50x150xf32>
    %c0_11 = arith.constant 0 : index
    %c0_12 = arith.constant 0 : index
    %11 = vector.load %arg1[%c0_11, %c0_12] : memref<150x128xf32, #tpu.memory_space<vmem>>, vector<150x128xf32>
    %cst_13 = arith.constant dense<0.000000e+00> : vector<50x128xf32>
    %12 = tpu.matmul %10, %11, %cst_13 {dimension_numbers = #tpu.dot_dimension_numbers<[1], [0], [0], [1], [0, 0, 1, 1], [], []>} : vector<50x150xf32>, vector<150x128xf32>, vector<50x128xf32> -> vector<50x128xf32>
    %13 = arith.maximumf %8, %12 : vector<50x128xf32>
    %c3 = arith.constant 3 : index
    %c0_14 = arith.constant 0 : index
    %c0_15 = arith.constant 0 : index
    %14 = vector.load %arg0[%c3, %c0_14, %c0_15] : memref<4x50x150xf32, #tpu.memory_space<vmem>>, vector<1x50x150xf32>
    %15 = vector.shape_cast %14 : vector<1x50x150xf32> to vector<50x150xf32>
    %c0_16 = arith.constant 0 : index
    %c0_17 = arith.constant 0 : index
    %16 = vector.load %arg1[%c0_16, %c0_17] : memref<150x128xf32, #tpu.memory_space<vmem>>, vector<150x128xf32>
    %cst_18 = arith.constant dense<0.000000e+00> : vector<50x128xf32>
    %17 = tpu.matmul %15, %16, %cst_18 {dimension_numbers = #tpu.dot_dimension_numbers<[1], [0], [0], [1], [0, 0, 1, 1], [], []>} : vector<50x150xf32>, vector<150x128xf32>, vector<50x128xf32> -> vector<50x128xf32>
    %18 = arith.maximumf %13, %17 : vector<50x128xf32>
    %c0_19 = arith.constant 0 : index
    %c0_20 = arith.constant 0 : index
    %19 = vector.load %arg2[%c0_19, %c0_20] : memref<1x128xf32, #tpu.memory_space<vmem>>, vector<1x128xf32>
    %20 = vector.broadcast %19 : vector<1x128xf32> to vector<50x128xf32>
    %21 = arith.addf %18, %20 : vector<50x128xf32>
    %cst_21 = arith.constant 0.000000e+00 : f32
    %22 = vector.broadcast %cst_21 : f32 to vector<50x128xf32>
    %23 = arith.maximumf %21, %22 : vector<50x128xf32>
    %c0_22 = arith.constant 0 : index
    %c0_23 = arith.constant 0 : index
    %24 = vector.load %arg3[%c0_22, %c0_23] : memref<50x128xf32, #tpu.memory_space<vmem>>, vector<50x128xf32>
    tpu.vector_store %arg3[%c0_22, %c0_23], %23 {strides = array<i32>} : memref<50x128xf32, #tpu.memory_space<vmem>>, vector<50x128xf32>,
    return
  }
}

module attributes {stable_mosaic.version = 11 : i64} {
  func.func @_head_kernel(%arg0: memref<2x400xf32, #tpu.memory_space<vmem>>, %arg1: memref<400x128xf32, #tpu.memory_space<vmem>>, %arg2: memref<1x128xf32, #tpu.memory_space<vmem>>, %arg3: memref<128x128xf32, #tpu.memory_space<vmem>>, %arg4: memref<1x128xf32, #tpu.memory_space<vmem>>, %arg5: memref<128x128xf32, #tpu.memory_space<vmem>>, %arg6: memref<1x128xf32, #tpu.memory_space<vmem>>, %arg7: memref<2x128xf32, #tpu.memory_space<vmem>>) attributes {dimension_semantics = [], scalar_prefetch = 0 : i64, scratch_operands = 0 : i64, tpu.core_type = #tpu.core_type<tc>} {
    %c0 = arith.constant 0 : index
    %c0_0 = arith.constant 0 : index
    %0 = vector.load %arg0[%c0, %c0_0] : memref<2x400xf32, #tpu.memory_space<vmem>>, vector<2x400xf32>
    %c0_1 = arith.constant 0 : index
    %c0_2 = arith.constant 0 : index
    %1 = vector.load %arg1[%c0_1, %c0_2] : memref<400x128xf32, #tpu.memory_space<vmem>>, vector<400x128xf32>
    %cst = arith.constant dense<0.000000e+00> : vector<2x128xf32>
    %2 = tpu.matmul %0, %1, %cst {dimension_numbers = #tpu.dot_dimension_numbers<[1], [0], [0], [1], [0, 0, 1, 1], [], []>} : vector<2x400xf32>, vector<400x128xf32>, vector<2x128xf32> -> vector<2x128xf32>
    %c0_3 = arith.constant 0 : index
    %c0_4 = arith.constant 0 : index
    %3 = vector.load %arg2[%c0_3, %c0_4] : memref<1x128xf32, #tpu.memory_space<vmem>>, vector<1x128xf32>
    %4 = vector.broadcast %3 : vector<1x128xf32> to vector<2x128xf32>
    %5 = arith.addf %2, %4 : vector<2x128xf32>
    %cst_5 = arith.constant 0.000000e+00 : f32
    %6 = vector.broadcast %cst_5 : f32 to vector<2x128xf32>
    %7 = arith.maximumf %5, %6 : vector<2x128xf32>
    %c0_6 = arith.constant 0 : index
    %c0_7 = arith.constant 0 : index
    %8 = vector.load %arg3[%c0_6, %c0_7] : memref<128x128xf32, #tpu.memory_space<vmem>>, vector<128x128xf32>
    %cst_8 = arith.constant dense<0.000000e+00> : vector<2x128xf32>
    %9 = tpu.matmul %7, %8, %cst_8 {dimension_numbers = #tpu.dot_dimension_numbers<[1], [0], [0], [1], [0, 0, 1, 1], [], []>} : vector<2x128xf32>, vector<128x128xf32>, vector<2x128xf32> -> vector<2x128xf32>
    %c0_9 = arith.constant 0 : index
    %c0_10 = arith.constant 0 : index
    %10 = vector.load %arg4[%c0_9, %c0_10] : memref<1x128xf32, #tpu.memory_space<vmem>>, vector<1x128xf32>
    %11 = vector.broadcast %10 : vector<1x128xf32> to vector<2x128xf32>
    %12 = arith.addf %9, %11 : vector<2x128xf32>
    %cst_11 = arith.constant 0.000000e+00 : f32
    %13 = vector.broadcast %cst_11 : f32 to vector<2x128xf32>
    %14 = arith.maximumf %12, %13 : vector<2x128xf32>
    %c0_12 = arith.constant 0 : index
    %c0_13 = arith.constant 0 : index
    %15 = vector.load %arg5[%c0_12, %c0_13] : memref<128x128xf32, #tpu.memory_space<vmem>>, vector<128x128xf32>
    %cst_14 = arith.constant dense<0.000000e+00> : vector<2x128xf32>
    %16 = tpu.matmul %14, %15, %cst_14 {dimension_numbers = #tpu.dot_dimension_numbers<[1], [0], [0], [1], [0, 0, 1, 1], [], []>} : vector<2x128xf32>, vector<128x128xf32>, vector<2x128xf32> -> vector<2x128xf32>
    %c0_15 = arith.constant 0 : index
    %c0_16 = arith.constant 0 : index
    %17 = vector.load %arg6[%c0_15, %c0_16] : memref<1x128xf32, #tpu.memory_space<vmem>>, vector<1x128xf32>
    %18 = vector.broadcast %17 : vector<1x128xf32> to vector<2x128xf32>
    %19 = arith.addf %16, %18 : vector<2x128xf32>
    %20 = math.tanh %19 : vector<2x128xf32>
    %c0_17 = arith.constant 0 : index
    %c0_18 = arith.constant 0 : index
    %21 = vector.load %arg7[%c0_17, %c0_18] : memref<2x128xf32, #tpu.memory_space<vmem>>, vector<2x128xf32>
    tpu.vector_store %arg7[%c0_17, %c0_18], %20 {strides = array<i32>} : memref<2x128xf32, #tpu.memory_space<vmem>>, vector<2x128xf32>,
    return
  }
}

</mosaic_0001>

<llo_original>
// kernel: _lambda_.3
$region0: #{_lambda_.3}
  #allocation0 [shape = 'u32[]', space=smem, size = 0x4, offset = 0x4, fixed_abs, tag = 'smem constant byte address 0x4 - core index']
  #allocation1 [shape = 'u32[72,128]{1,0:T(1,128)}', space=vmem, size = 0x9000, scoped, tag = 'internal scratch']
  %s0 = inlined_call_operand.vmem [shape: f32[4,392,25], index: 0, kind: input, shape index: {}]
  %s1 = inlined_call_operand.vmem [shape: f32[25,128], index: 1, kind: input, shape index: {}]
  %s2 = inlined_call_operand.vmem [shape: f32[1,128], index: 2, kind: input, shape index: {}]
  %s3 = inlined_call_operand.vmem [shape: f32[392,128], index: 3, kind: output, shape index: {}]
  %s4 = sld [smem:[#allocation0]]
  $region22: #{_lambda_.3} parent=0
    _
  %s6 = ssub.s32 1, %s4
  %s7 = scalar_select 0, %s6, %s4
  // Predicated region
  $region2: #{_lambda_.3} parent=0 // pred_check
    _
  $region3: #{_lambda_.3} parent=0 // pred_check_branch
    %9 = sbr.rel (0) target = $region5
  $region4: #{_lambda_.3} parent=0 // pred_region
    _
  $region5: #{_lambda_.3} parent=0 // pred_fallthru
    _
  // Predicated region
  $region6: #{_lambda_.3} parent=0 // pred_check
    _
  $region7: #{_lambda_.3} parent=0 // pred_check_branch
    %11 = sbr.rel (0) target = $region9
  $region8: #{_lambda_.3} parent=0 // pred_region
    _
  $region9: #{_lambda_.3} parent=0 // pred_fallthru
    _
  // Predicated region
  $region10: #{_lambda_.3} parent=0 // pred_check
    _
  $region11: #{_lambda_.3} parent=0 // pred_check_branch
    %13 = sbr.rel (0) target = $region13
  $region12: #{_lambda_.3} parent=0 // pred_region
    _
  $region13: #{_lambda_.3} parent=0 // pred_fallthru
    _
  %v14 = vld [vmem:[%s0] sm:$0xff]
  %v15 = vld [vmem:[%s0 + $0x8] sm:$0xff]
  %v16 = vld [vmem:[%s0 + $0x10] sm:$0xff]
  %v17 = vld [vmem:[%s0 + $0x18] sm:$0xff]
  %v18 = vld [vmem:[%s0 + $0x20] sm:$0xff]
  %v19 = vld [vmem:[%s0 + $0x28] sm:$0xff]
  %v20 = vld [vmem:[%s0 + $0x30] sm:$0xff]
  %v21 = vld [vmem:[%s0 + $0x38] sm:$0xff]
  %v22 = vld [vmem:[%s0 + $0x40] sm:$0xff]
  %v23 = vld [vmem:[%s0 + $0x48] sm:$0xff]
  %v24 = vld [vmem:[%s0 + $0x50] sm:$0xff]
  %v25 = vld [vmem:[%s0 + $0x58] sm:$0xff]
  %v26 = vld [vmem:[%s0 + $0x60] sm:$0xff]
  %v27 = vld [vmem:[%s0 + $0x68] sm:$0xff]
  %v28 = vld [vmem:[%s0 + $0x70] sm:$0xff]
  %v29 = vld [vmem:[%s0 + $0x78] sm:$0xff]
  %v30 = vld [vmem:[%s0 + $0x80] sm:$0xff]
  %v31 = vld [vmem:[%s0 + $0x88] sm:$0xff]
  %v32 = vld [vmem:[%s0 + $0x90] sm:$0xff]
  %v33 = vld [vmem:[%s0 + $0x98] sm:$0xff]
  %v34 = vld [vmem:[%s0 + $0xa0] sm:$0xff]
  %v35 = vld [vmem:[%s0 + $0xa8] sm:$0xff]
  %v36 = vld [vmem:[%s0 + $0xb0] sm:$0xff]
  %v37 = vld [vmem:[%s0 + $0xb8] sm:$0xff]
  %v38 = vld [vmem:[%s0 + $0xc0] sm:$0xff]
  %v39 = vld [vmem:[%s0 + $0xc8] sm:$0xff]
  %v40 = vld [vmem:[%s0 + $0xd0] sm:$0xff]
  %v41 = vld [vmem:[%s0 + $0xd8] sm:$0xff]
  %v42 = vld [vmem:[%s0 + $0xe0] sm:$0xff]
  %v43 = vld [vmem:[%s0 + $0xe8] sm:$0xff]
  %v44 = vld [vmem:[%s0 + $0xf0] sm:$0xff]
  %v45 = vld [vmem:[%s0 + $0xf8] sm:$0xff]
  %v46 = vld [vmem:[%s0 + $0x100] sm:$0xff]
  %v47 = vld [vmem:[%s0 + $0x108] sm:$0xff]
  %v48 = vld [vmem:[%s0 + $0x110] sm:$0xff]
  %v49 = vld [vmem:[%s0 + $0x118] sm:$0xff]
  %v50 = vld [vmem:[%s0 + $0x120] sm:$0xff]
  %v51 = vld [vmem:[%s0 + $0x128] sm:$0xff]
  %v52 = vld [vmem:[%s0 + $0x130] sm:$0xff]
  %v53 = vld [vmem:[%s0 + $0x138] sm:$0xff]
  %v54 = vld [vmem:[%s0 + $0x140] sm:$0xff]
  %v55 = vld [vmem:[%s0 + $0x148] sm:$0xff]
  %v56 = vld [vmem:[%s0 + $0x150] sm:$0xff]
  %v57 = vld [vmem:[%s0 + $0x158] sm:$0xff]
  %v58 = vld [vmem:[%s0 + $0x160] sm:$0xff]
  %v59 = vld [vmem:[%s0 + $0x168] sm:$0xff]
  %v60 = vld [vmem:[%s0 + $0x170] sm:$0xff]
  %v61 = vld [vmem:[%s0 + $0x178] sm:$0xff]
  %v62 = vld [vmem:[%s0 + $0x180] sm:$0xff]
  %v63 = vld [vmem:[%s1] sm:$0xff]
  %v64 = vld [vmem:[%s1 + $0x8] sm:$0xff]
  %v65 = vld [vmem:[%s1 + $0x10] sm:$0xff]
  %v66 = vld [vmem:[%s1 + $0x18] sm:$0x1]
  %vm67 = vcmask 203776
  %v69 = vsel %vm67, %v14, 0
  %v72 = vsel %vm67, %v15, 0
  %v75 = vsel %vm67, %v16, 0
  %v78 = vsel %vm67, %v17, 0
  %v81 = vsel %vm67, %v18, 0
  %v84 = vsel %vm67, %v19, 0
  %v87 = vsel %vm67, %v20, 0
  %v90 = vsel %vm67, %v21, 0
  %v93 = vsel %vm67, %v22, 0
  %v96 = vsel %vm67, %v23, 0
  %v99 = vsel %vm67, %v24, 0
  %v102 = vsel %vm67, %v25, 0
  %v105 = vsel %vm67, %v26, 0
  %v108 = vsel %vm67, %v27, 0
  %v111 = vsel %vm67, %v28, 0
  %v114 = vsel %vm67, %v29, 0
  %v117 = vsel %vm67, %v30, 0
  %v120 = vsel %vm67, %v31, 0
  %v123 = vsel %vm67, %v32, 0
  %v126 = vsel %vm67, %v33, 0
  %v129 = vsel %vm67, %v34, 0
  %v132 = vsel %vm67, %v35, 0
  %v135 = vsel %vm67, %v36, 0
  %v138 = vsel %vm67, %v37, 0
  %v141 = vsel %vm67, %v38, 0
  %v144 = vsel %vm67, %v39, 0
  %v147 = vsel %vm67, %v40, 0
  %v150 = vsel %vm67, %v41, 0
  %v153 = vsel %vm67, %v42, 0
  %v156 = vsel %vm67, %v43, 0
  %v159 = vsel %vm67, %v44, 0
  %v162 = vsel %vm67, %v45, 0
  %v165 = vsel %vm67, %v46, 0
  %v168 = vsel %vm67, %v47, 0
  %v171 = vsel %vm67, %v48, 0
  %v174 = vsel %vm67, %v49, 0
  %v177 = vsel %vm67, %v50, 0
  %v180 = vsel %vm67, %v51, 0
  %v183 = vsel %vm67, %v52, 0
  %v186 = vsel %vm67, %v53, 0
  %v189 = vsel %vm67, %v54, 0
  %v192 = vsel %vm67, %v55, 0
  %v195 = vsel %vm67, %v56, 0
  %v198 = vsel %vm67, %v57, 0
  %v201 = vsel %vm67, %v58, 0
  %v204 = vsel %vm67, %v59, 0
  %v207 = vsel %vm67, %v60, 0
  %v210 = vsel %vm67, %v61, 0
  %v213 = vsel %vm67, %v62, 0
  %vm215 = vcmask 1040384
  %v217 = vsel %vm215, %v66, 0
  %219 = vmatpush.msra.mxu0 0.0
  %220 = vmatpush.msra.mxu0 0.0
  %221 = vmatpush.msra.mxu0 0.0
  %222 = vmatpush.msra.mxu0 0.0
  %223 = vmatpush.msra.mxu0 0.0
  %224 = vmatpush.msra.mxu0 0.0
  %225 = vmatpush.msra.mxu0 0.0
  %226 = vmatpush.msra.mxu0 0.0
  %227 = vmatpush.msra.mxu0 0.0
  %228 = vmatpush.msra.mxu0 0.0
  %229 = vmatpush.msra.mxu0 0.0
  %230 = vmatpush.msra.mxu0 0.0
  %231 = vmatpush.msra.mxu0 %v217
  %232 = vmatpush.msra.mxu0 %v65
  %233 = vmatpush.msra.mxu0 %v64
  %234 = vmatpush.msra.mxu0 %v63
  %235 = vmatmul.f32.gmra.mxu0 %v69
  %v236 = vpop.f32.mrf.mxu0
  %v237 = vadd.f32 0.0, %v236
  %238 = vmatmul.f32.gmra.mxu0 %v72
  %v239 = vpop.f32.mrf.mxu0
  %v240 = vadd.f32 0.0, %v239
  %241 = vmatmul.f32.gmra.mxu0 %v75
  %v242 = vpop.f32.mrf.mxu0
  %v243 = vadd.f32 0.0, %v242
  %244 = vmatmul.f32.gmra.mxu0 %v78
  %v245 = vpop.f32.mrf.mxu0
  %v246 = vadd.f32 0.0, %v245
  %247 = vmatmul.f32.gmra.mxu0 %v81
  %v248 = vpop.f32.mrf.mxu0
  %v249 = vadd.f32 0.0, %v248
  %250 = vmatmul.f32.gmra.mxu0 %v84
  %v251 = vpop.f32.mrf.mxu0
  %v252 = vadd.f32 0.0, %v251
  %253 = vmatmul.f32.gmra.mxu0 %v87
  %v254 = vpop.f32.mrf.mxu0
  %v255 = vadd.f32 0.0, %v254
  %256 = vmatmul.f32.gmra.mxu0 %v90
  %v257 = vpop.f32.mrf.mxu0
  %v258 = vadd.f32 0.0, %v257
  %259 = vmatmul.f32.gmra.mxu0 %v93
  %v260 = vpop.f32.mrf.mxu0
  %v261 = vadd.f32 0.0, %v260
  %262 = vmatmul.f32.gmra.mxu0 %v96
  %v263 = vpop.f32.mrf.mxu0
  %v264 = vadd.f32 0.0, %v263
  %265 = vmatmul.f32.gmra.mxu0 %v99
  %v266 = vpop.f32.mrf.mxu0
  %v267 = vadd.f32 0.0, %v266
  %268 = vmatmul.f32.gmra.mxu0 %v102
  %v269 = vpop.f32.mrf.mxu0
  %v270 = vadd.f32 0.0, %v269
  %271 = vmatmul.f32.gmra.mxu0 %v105
  %v272 = vpop.f32.mrf.mxu0
  %v273 = vadd.f32 0.0, %v272
  %274 = vmatmul.f32.gmra.mxu0 %v108
  %v275 = vpop.f32.mrf.mxu0
  %v276 = vadd.f32 0.0, %v275
  %277 = vmatmul.f32.gmra.mxu0 %v111
  %v278 = vpop.f32.mrf.mxu0
  %v279 = vadd.f32 0.0, %v278
  %280 = vmatmul.f32.gmra.mxu0 %v114
  %v281 = vpop.f32.mrf.mxu0
  %v282 = vadd.f32 0.0, %v281
  %283 = vmatmul.f32.gmra.mxu0 %v117
  %v284 = vpop.f32.mrf.mxu0
  %v285 = vadd.f32 0.0, %v284
  %286 = vmatmul.f32.gmra.mxu0 %v120
  %v287 = vpop.f32.mrf.mxu0
  %v288 = vadd.f32 0.0, %v287
  %289 = vmatmul.f32.gmra.mxu0 %v123
  %v290 = vpop.f32.mrf.mxu0
  %v291 = vadd.f32 0.0, %v290
  %292 = vmatmul.f32.gmra.mxu0 %v126
  %v293 = vpop.f32.mrf.mxu0
  %v294 = vadd.f32 0.0, %v293
  %295 = vmatmul.f32.gmra.mxu0 %v129
  %v296 = vpop.f32.mrf.mxu0
  %v297 = vadd.f32 0.0, %v296
  %298 = vmatmul.f32.gmra.mxu0 %v132
  %v299 = vpop.f32.mrf.mxu0
  %v300 = vadd.f32 0.0, %v299
  %301 = vmatmul.f32.gmra.mxu0 %v135
  %v302 = vpop.f32.mrf.mxu0
  %v303 = vadd.f32 0.0, %v302
  %304 = vmatmul.f32.gmra.mxu0 %v138
  %v305 = vpop.f32.mrf.mxu0
  %v306 = vadd.f32 0.0, %v305
  %307 = vmatmul.f32.gmra.mxu0 %v141
  %v308 = vpop.f32.mrf.mxu0
  %v309 = vadd.f32 0.0, %v308
  %310 = vmatmul.f32.gmra.mxu0 %v144
  %v311 = vpop.f32.mrf.mxu0
  %v312 = vadd.f32 0.0, %v311
  %313 = vmatmul.f32.gmra.mxu0 %v147
  %v314 = vpop.f32.mrf.mxu0
  %v315 = vadd.f32 0.0, %v314
  %316 = vmatmul.f32.gmra.mxu0 %v150
  %v317 = vpop.f32.mrf.mxu0
  %v318 = vadd.f32 0.0, %v317
  %319 = vmatmul.f32.gmra.mxu0 %v153
  %v320 = vpop.f32.mrf.mxu0
  %v321 = vadd.f32 0.0, %v320
  %322 = vmatmul.f32.gmra.mxu0 %v156
  %v323 = vpop.f32.mrf.mxu0
  %v324 = vadd.f32 0.0, %v323
  %325 = vmatmul.f32.gmra.mxu0 %v159
  %v326 = vpop.f32.mrf.mxu0
  %v327 = vadd.f32 0.0, %v326
  %328 = vmatmul.f32.gmra.mxu0 %v162
  %v329 = vpop.f32.mrf.mxu0
  %v330 = vadd.f32 0.0, %v329
  %331 = vmatmul.f32.gmra.mxu0 %v165
  %v332 = vpop.f32.mrf.mxu0
  %v333 = vadd.f32 0.0, %v332
  %334 = vmatmul.f32.gmra.mxu0 %v168
  %v335 = vpop.f32.mrf.mxu0
  %v336 = vadd.f32 0.0, %v335
  %337 = vmatmul.f32.gmra.mxu0 %v171
  %v338 = vpop.f32.mrf.mxu0
  %v339 = vadd.f32 0.0, %v338
  %340 = vmatmul.f32.gmra.mxu0 %v174
  %v341 = vpop.f32.mrf.mxu0
  %v342 = vadd.f32 0.0, %v341
  %343 = vmatmul.f32.gmra.mxu0 %v177
  %v344 = vpop.f32.mrf.mxu0
  %v345 = vadd.f32 0.0, %v344
  %346 = vmatmul.f32.gmra.mxu0 %v180
  %v347 = vpop.f32.mrf.mxu0
  %v348 = vadd.f32 0.0, %v347
  %349 = vmatmul.f32.gmra.mxu0 %v183
  %v350 = vpop.f32.mrf.mxu0
  %v351 = vadd.f32 0.0, %v350
  %352 = vmatmul.f32.gmra.mxu0 %v186
  %v353 = vpop.f32.mrf.mxu0
  %v354 = vadd.f32 0.0, %v353
  %355 = vmatmul.f32.gmra.mxu0 %v189
  %v356 = vpop.f32.mrf.mxu0
  %v357 = vadd.f32 0.0, %v356
  %358 = vmatmul.f32.gmra.mxu0 %v192
  %v359 = vpop.f32.mrf.mxu0
  %v360 = vadd.f32 0.0, %v359
  %361 = vmatmul.f32.gmra.mxu0 %v195
  %v362 = vpop.f32.mrf.mxu0
  %v363 = vadd.f32 0.0, %v362
  %364 = vmatmul.f32.gmra.mxu0 %v198
  %v365 = vpop.f32.mrf.mxu0
  %v366 = vadd.f32 0.0, %v365
  %367 = vmatmul.f32.gmra.mxu0 %v201
  %v368 = vpop.f32.mrf.mxu0
  %v369 = vadd.f32 0.0, %v368
  %370 = vmatmul.f32.gmra.mxu0 %v204
  %v371 = vpop.f32.mrf.mxu0
  %v372 = vadd.f32 0.0, %v371
  %373 = vmatmul.f32.gmra.mxu0 %v207
  %v374 = vpop.f32.mrf.mxu0
  %v375 = vadd.f32 0.0, %v374
  %376 = vmatmul.f32.gmra.mxu0 %v210
  %v377 = vpop.f32.mrf.mxu0
  %v378 = vadd.f32 0.0, %v377
  %379 = vmatmul.f32.gmra.mxu0 %v213
  %v380 = vpop.f32.mrf.mxu0
  %v381 = vadd.f32 0.0, %v380
  %382 = vdwg.mxu0
  %s383 = scalar_lea.vmem %s0, 392
  %v384 = vld [vmem:[%s383] sm:$0xff]
  %v385 = vld [vmem:[%s383 + $0x8] sm:$0xff]
  %v386 = vld [vmem:[%s383 + $0x10] sm:$0xff]
  %v387 = vld [vmem:[%s383 + $0x18] sm:$0xff]
  %v388 = vld [vmem:[%s383 + $0x20] sm:$0xff]
  %v389 = vld [vmem:[%s383 + $0x28] sm:$0xff]
  %v390 = vld [vmem:[%s383 + $0x30] sm:$0xff]
  %v391 = vld [vmem:[%s383 + $0x38] sm:$0xff]
  %v392 = vld [vmem:[%s383 + $0x40] sm:$0xff]
  %v393 = vld [vmem:[%s383 + $0x48] sm:$0xff]
  %v394 = vld [vmem:[%s383 + $0x50] sm:$0xff]
  %v395 = vld [vmem:[%s383 + $0x58] sm:$0xff]
  %v396 = vld [vmem:[%s383 + $0x60] sm:$0xff]
  %v397 = vld [vmem:[%s383 + $0x68] sm:$0xff]
  %v398 = vld [vmem:[%s383 + $0x70] sm:$0xff]
  %v399 = vld [vmem:[%s383 + $0x78] sm:$0xff]
  %v400 = vld [vmem:[%s383 + $0x80] sm:$0xff]
  %v401 = vld [vmem:[%s383 + $0x88] sm:$0xff]
  %v402 = vld [vmem:[%s383 + $0x90] sm:$0xff]
  %v403 = vld [vmem:[%s383 + $0x98] sm:$0xff]
  %v404 = vld [vmem:[%s383 + $0xa0] sm:$0xff]
  %v405 = vld [vmem:[%s383 + $0xa8] sm:$0xff]
  %v406 = vld [vmem:[%s383 + $0xb0] sm:$0xff]
  %v407 = vld [vmem:[%s383 + $0xb8] sm:$0xff]
  %v408 = vld [vmem:[%s383 + $0xc0] sm:$0xff]
  %v409 = vld [vmem:[%s383 + $0xc8] sm:$0xff]
  %v410 = vld [vmem:[%s383 + $0xd0] sm:$0xff]
  %v411 = vld [vmem:[%s383 + $0xd8] sm:$0xff]
  %v412 = vld [vmem:[%s383 + $0xe0] sm:$0xff]
  %v413 = vld [vmem:[%s383 + $0xe8] sm:$0xff]
  %v414 = vld [vmem:[%s383 + $0xf0] sm:$0xff]
  %v415 = vld [vmem:[%s383 + $0xf8] sm:$0xff]
  %v416 = vld [vmem:[%s383 + $0x100] sm:$0xff]
  %v417 = vld [vmem:[%s383 + $0x108] sm:$0xff]
  %v418 = vld [vmem:[%s383 + $0x110] sm:$0xff]
  %v419 = vld [vmem:[%s383 + $0x118] sm:$0xff]
  %v420 = vld [vmem:[%s383 + $0x120] sm:$0xff]
  %v421 = vld [vmem:[%s383 + $0x128] sm:$0xff]
  %v422 = vld [vmem:[%s383 + $0x130] sm:$0xff]
  %v423 = vld [vmem:[%s383 + $0x138] sm:$0xff]
  %v424 = vld [vmem:[%s383 + $0x140] sm:$0xff]
  %v425 = vld [vmem:[%s383 + $0x148] sm:$0xff]
  %v426 = vld [vmem:[%s383 + $0x150] sm:$0xff]
  %v427 = vld [vmem:[%s383 + $0x158] sm:$0xff]
  %v428 = vld [vmem:[%s383 + $0x160] sm:$0xff]
  %v429 = vld [vmem:[%s383 + $0x168] sm:$0xff]
  %v430 = vld [vmem:[%s383 + $0x170] sm:$0xff]
  %v431 = vld [vmem:[%s383 + $0x178] sm:$0xff]
  %v432 = vld [vmem:[%s383 + $0x180] sm:$0xff]
  %v434 = vsel %vm67, %v384, 0
  %v437 = vsel %vm67, %v385, 0
  %v440 = vsel %vm67, %v386, 0
  %v443 = vsel %vm67, %v387, 0
  %v446 = vsel %vm67, %v388, 0
  %v449 = vsel %vm67, %v389, 0
  %v452 = vsel %vm67, %v390, 0
  %v455 = vsel %vm67, %v391, 0
  %v458 = vsel %vm67, %v392, 0
  %v461 = vsel %vm67, %v393, 0
  %v464 = vsel %vm67, %v394, 0
  %v467 = vsel %vm67, %v395, 0
  %v470 = vsel %vm67, %v396, 0
  %v473 = vsel %vm67, %v397, 0
  %v476 = vsel %vm67, %v398, 0
  %v479 = vsel %vm67, %v399, 0
  %v482 = vsel %vm67, %v400, 0
  %v485 = vsel %vm67, %v401, 0
  %v488 = vsel %vm67, %v402, 0
  %v491 = vsel %vm67, %v403, 0
  %v494 = vsel %vm67, %v404, 0
  %v497 = vsel %vm67, %v405, 0
  %v500 = vsel %vm67, %v406, 0
  %v503 = vsel %vm67, %v407, 0
  %v506 = vsel %vm67, %v408, 0
  %v509 = vsel %vm67, %v409, 0
  %v512 = vsel %vm67, %v410, 0
  %v515 = vsel %vm67, %v411, 0
  %v518 = vsel %vm67, %v412, 0
  %v521 = vsel %vm67, %v413, 0
  %v524 = vsel %vm67, %v414, 0
  %v527 = vsel %vm67, %v415, 0
  %v530 = vsel %vm67, %v416, 0
  %v533 = vsel %vm67, %v417, 0
  %v536 = vsel %vm67, %v418, 0
  %v539 = vsel %vm67, %v419, 0
  %v542 = vsel %vm67, %v420, 0
  %v545 = vsel %vm67, %v421, 0
  %v548 = vsel %vm67, %v422, 0
  %v551 = vsel %vm67, %v423, 0
  %v554 = vsel %vm67, %v424, 0
  %v557 = vsel %vm67, %v425, 0
  %v560 = vsel %vm67, %v426, 0
  %v563 = vsel %vm67, %v427, 0
  %v566 = vsel %vm67, %v428, 0
  %v569 = vsel %vm67, %v429, 0
  %v572 = vsel %vm67, %v430, 0
  %v575 = vsel %vm67, %v431, 0
  %v578 = vsel %vm67, %v432, 0
  %580 = vmatpush.msra.mxu0 0.0
  %581 = vmatpush.msra.mxu0 0.0
  %582 = vmatpush.msra.mxu0 0.0
  %583 = vmatpush.msra.mxu0 0.0
  %584 = vmatpush.msra.mxu0 0.0
  %585 = vmatpush.msra.mxu0 0.0
  %586 = vmatpush.msra.mxu0 0.0
  %587 = vmatpush.msra.mxu0 0.0
  %588 = vmatpush.msra.mxu0 0.0
  %589 = vmatpush.msra.mxu0 0.0
  %590 = vmatpush.msra.mxu0 0.0
  %591 = vmatpush.msra.mxu0 0.0
  %592 = vmatpush.msra.mxu0 %v217
  %593 = vmatpush.msra.mxu0 %v65
  %594 = vmatpush.msra.mxu0 %v64
  %595 = vmatpush.msra.mxu0 %v63
  %596 = vmatmul.f32.gmra.mxu0 %v434
  %v597 = vpop.f32.mrf.mxu0
  %v598 = vadd.f32 0.0, %v597
  %599 = vmatmul.f32.gmra.mxu0 %v437
  %v600 = vpop.f32.mrf.mxu0
  %v601 = vadd.f32 0.0, %v600
  %602 = vmatmul.f32.gmra.mxu0 %v440
  %v603 = vpop.f32.mrf.mxu0
  %v604 = vadd.f32 0.0, %v603
  %605 = vmatmul.f32.gmra.mxu0 %v443
  %v606 = vpop.f32.mrf.mxu0
  %v607 = vadd.f32 0.0, %v606
  %608 = vmatmul.f32.gmra.mxu0 %v446
  %v609 = vpop.f32.mrf.mxu0
  %v610 = vadd.f32 0.0, %v609
  %611 = vmatmul.f32.gmra.mxu0 %v449
  %v612 = vpop.f32.mrf.mxu0
  %v613 = vadd.f32 0.0, %v612
  %614 = vmatmul.f32.gmra.mxu0 %v452
  %v615 = vpop.f32.mrf.mxu0
  %v616 = vadd.f32 0.0, %v615
  %617 = vmatmul.f32.gmra.mxu0 %v455
  %v618 = vpop.f32.mrf.mxu0
  %v619 = vadd.f32 0.0, %v618
  %620 = vmatmul.f32.gmra.mxu0 %v458
  %v621 = vpop.f32.mrf.mxu0
  %v622 = vadd.f32 0.0, %v621
  %623 = vmatmul.f32.gmra.mxu0 %v461
  %v624 = vpop.f32.mrf.mxu0
  %v625 = vadd.f32 0.0, %v624
  %626 = vmatmul.f32.gmra.mxu0 %v464
  %v627 = vpop.f32.mrf.mxu0
  %v628 = vadd.f32 0.0, %v627
  %629 = vmatmul.f32.gmra.mxu0 %v467
  %v630 = vpop.f32.mrf.mxu0
  %v631 = vadd.f32 0.0, %v630
  %632 = vmatmul.f32.gmra.mxu0 %v470
  %v633 = vpop.f32.mrf.mxu0
  %v634 = vadd.f32 0.0, %v633
  %635 = vmatmul.f32.gmra.mxu0 %v473
  %v636 = vpop.f32.mrf.mxu0
  %v637 = vadd.f32 0.0, %v636
  %638 = vmatmul.f32.gmra.mxu0 %v476
  %v639 = vpop.f32.mrf.mxu0
  %v640 = vadd.f32 0.0, %v639
  %641 = vmatmul.f32.gmra.mxu0 %v479
  %v642 = vpop.f32.mrf.mxu0
  %v643 = vadd.f32 0.0, %v642
  %644 = vmatmul.f32.gmra.mxu0 %v482
  %v645 = vpop.f32.mrf.mxu0
  %v646 = vadd.f32 0.0, %v645
  %647 = vmatmul.f32.gmra.mxu0 %v485
  %v648 = vpop.f32.mrf.mxu0
  %v649 = vadd.f32 0.0, %v648
  %650 = vmatmul.f32.gmra.mxu0 %v488
  %v651 = vpop.f32.mrf.mxu0
  %v652 = vadd.f32 0.0, %v651
  %653 = vmatmul.f32.gmra.mxu0 %v491
  %v654 = vpop.f32.mrf.mxu0
  %v655 = vadd.f32 0.0, %v654
  %656 = vmatmul.f32.gmra.mxu0 %v494
  %v657 = vpop.f32.mrf.mxu0
  %v658 = vadd.f32 0.0, %v657
  %659 = vmatmul.f32.gmra.mxu0 %v497
  %v660 = vpop.f32.mrf.mxu0
  %v661 = vadd.f32 0.0, %v660
  %662 = vmatmul.f32.gmra.mxu0 %v500
  %v663 = vpop.f32.mrf.mxu0
  %v664 = vadd.f32 0.0, %v663
  %665 = vmatmul.f32.gmra.mxu0 %v503
  %v666 = vpop.f32.mrf.mxu0
  %v667 = vadd.f32 0.0, %v666
  %668 = vmatmul.f32.gmra.mxu0 %v506
  %v669 = vpop.f32.mrf.mxu0
  %v670 = vadd.f32 0.0, %v669
  %671 = vmatmul.f32.gmra.mxu0 %v509
  %v672 = vpop.f32.mrf.mxu0
  %v673 = vadd.f32 0.0, %v672
  %674 = vmatmul.f32.gmra.mxu0 %v512
  %v675 = vpop.f32.mrf.mxu0
  %v676 = vadd.f32 0.0, %v675
  %677 = vmatmul.f32.gmra.mxu0 %v515
  %v678 = vpop.f32.mrf.mxu0
  %v679 = vadd.f32 0.0, %v678
  %680 = vmatmul.f32.gmra.mxu0 %v518
  %v681 = vpop.f32.mrf.mxu0
  %v682 = vadd.f32 0.0, %v681
  %683 = vmatmul.f32.gmra.mxu0 %v521
  %v684 = vpop.f32.mrf.mxu0
  %v685 = vadd.f32 0.0, %v684
  %686 = vmatmul.f32.gmra.mxu0 %v524
  %v687 = vpop.f32.mrf.mxu0
  %v688 = vadd.f32 0.0, %v687
  %689 = vmatmul.f32.gmra.mxu0 %v527
  %v690 = vpop.f32.mrf.mxu0
  %v691 = vadd.f32 0.0, %v690
  %692 = vmatmul.f32.gmra.mxu0 %v530
  %v693 = vpop.f32.mrf.mxu0
  %v694 = vadd.f32 0.0, %v693
  %695 = vmatmul.f32.gmra.mxu0 %v533
  %v696 = vpop.f32.mrf.mxu0
  %v697 = vadd.f32 0.0, %v696
  %698 = vmatmul.f32.gmra.mxu0 %v536
  %v699 = vpop.f32.mrf.mxu0
  %v700 = vadd.f32 0.0, %v699
  %701 = vmatmul.f32.gmra.mxu0 %v539
  %v702 = vpop.f32.mrf.mxu0
  %v703 = vadd.f32 0.0, %v702
  %704 = vmatmul.f32.gmra.mxu0 %v542
  %v705 = vpop.f32.mrf.mxu0
  %v706 = vadd.f32 0.0, %v705
  %707 = vmatmul.f32.gmra.mxu0 %v545
  %v708 = vpop.f32.mrf.mxu0
  %v709 = vadd.f32 0.0, %v708
  %710 = vmatmul.f32.gmra.mxu0 %v548
  %v711 = vpop.f32.mrf.mxu0
  %v712 = vadd.f32 0.0, %v711
  %713 = vmatmul.f32.gmra.mxu0 %v551
  %v714 = vpop.f32.mrf.mxu0
  %v715 = vadd.f32 0.0, %v714
  %716 = vmatmul.f32.gmra.mxu0 %v554
  %v717 = vpop.f32.mrf.mxu0
  %v718 = vadd.f32 0.0, %v717
  %719 = vmatmul.f32.gmra.mxu0 %v557
  %v720 = vpop.f32.mrf.mxu0
  %v721 = vadd.f32 0.0, %v720
  %722 = vmatmul.f32.gmra.mxu0 %v560
  %v723 = vpop.f32.mrf.mxu0
  %v724 = vadd.f32 0.0, %v723
  %725 = vmatmul.f32.gmra.mxu0 %v563
  %v726 = vpop.f32.mrf.mxu0
  %v727 = vadd.f32 0.0, %v726
  %728 = vmatmul.f32.gmra.mxu0 %v566
  %v729 = vpop.f32.mrf.mxu0
  %v730 = vadd.f32 0.0, %v729
  %731 = vmatmul.f32.gmra.mxu0 %v569
  %v732 = vpop.f32.mrf.mxu0
  %v733 = vadd.f32 0.0, %v732
  %734 = vmatmul.f32.gmra.mxu0 %v572
  %v735 = vpop.f32.mrf.mxu0
  %v736 = vadd.f32 0.0, %v735
  %737 = vmatmul.f32.gmra.mxu0 %v575
  %v738 = vpop.f32.mrf.mxu0
  %v739 = vadd.f32 0.0, %v738
  %740 = vmatmul.f32.gmra.mxu0 %v578
  %v741 = vpop.f32.mrf.mxu0
  %v742 = vadd.f32 0.0, %v741
  %743 = vdwg.mxu0
  %v744 = vmax.f32 %v237, %v598
  %v745 = vmax.f32 %v240, %v601
  %v746 = vmax.f32 %v243, %v604
  %v747 = vmax.f32 %v246, %v607
  %v748 = vmax.f32 %v249, %v610
  %v749 = vmax.f32 %v252, %v613
  %v750 = vmax.f32 %v255, %v616
  %v751 = vmax.f32 %v258, %v619
  %v752 = vmax.f32 %v261, %v622
  %v753 = vmax.f32 %v264, %v625
  %v754 = vmax.f32 %v267, %v628
  %v755 = vmax.f32 %v270, %v631
  %v756 = vmax.f32 %v273, %v634
  %v757 = vmax.f32 %v276, %v637
  %v758 = vmax.f32 %v279, %v640
  %v759 = vmax.f32 %v282, %v643
  %v760 = vmax.f32 %v285, %v646
  %v761 = vmax.f32 %v288, %v649
  %v762 = vmax.f32 %v291, %v652
  %v763 = vmax.f32 %v294, %v655
  %v764 = vmax.f32 %v297, %v658
  %v765 = vmax.f32 %v300, %v661
  %v766 = vmax.f32 %v303, %v664
  %v767 = vmax.f32 %v306, %v667
  %v768 = vmax.f32 %v309, %v670
  %v769 = vmax.f32 %v312, %v673
  %v770 = vmax.f32 %v315, %v676
  %v771 = vmax.f32 %v318, %v679
  %v772 = vmax.f32 %v321, %v682
  %v773 = vmax.f32 %v324, %v685
  %v774 = vmax.f32 %v327, %v688
  %v775 = vmax.f32 %v330, %v691
  %v776 = vmax.f32 %v333, %v694
  %v777 = vmax.f32 %v336, %v697
  %v778 = vmax.f32 %v339, %v700
  %v779 = vmax.f32 %v342, %v703
  %v780 = vmax.f32 %v345, %v706
  %v781 = vmax.f32 %v348, %v709
  %v782 = vmax.f32 %v351, %v712
  %v783 = vmax.f32 %v354, %v715
  %v784 = vmax.f32 %v357, %v718
  %v785 = vmax.f32 %v360, %v721
  %v786 = vmax.f32 %v363, %v724
  %v787 = vmax.f32 %v366, %v727
  %v788 = vmax.f32 %v369, %v730
  %v789 = vmax.f32 %v372, %v733
  %v790 = vmax.f32 %v375, %v736
  %v791 = vmax.f32 %v378, %v739
  %v792 = vmax.f32 %v381, %v742
  %s793 = scalar_lea.vmem %s0, 784
  %v794 = vld [vmem:[%s793] sm:$0xff]
  %v795 = vld [vmem:[%s793 + $0x8] sm:$0xff]
  %v796 = vld [vmem:[%s793 + $0x10] sm:$0xff]
  %v797 = vld [vmem:[%s793 + $0x18] sm:$0xff]
  %v798 = vld [vmem:[%s793 + $0x20] sm:$0xff]
  %v799 = vld [vmem:[%s793 + $0x28] sm:$0xff]
  %v800 = vld [vmem:[%s793 + $0x30] sm:$0xff]
  %v801 = vld [vmem:[%s793 + $0x38] sm:$0xff]
  %v802 = vld [vmem:[%s793 + $0x40] sm:$0xff]
  %v803 = vld [vmem:[%s793 + $0x48] sm:$0xff]
  %v804 = vld [vmem:[%s793 + $0x50] sm:$0xff]
  %v805 = vld [vmem:[%s793 + $0x58] sm:$0xff]
  %v806 = vld [vmem:[%s793 + $0x60] sm:$0xff]
  %v807 = vld [vmem:[%s793 + $0x68] sm:$0xff]
  %v808 = vld [vmem:[%s793 + $0x70] sm:$0xff]
  %v809 = vld [vmem:[%s793 + $0x78] sm:$0xff]
  %v810 = vld [vmem:[%s793 + $0x80] sm:$0xff]
  %v811 = vld [vmem:[%s793 + $0x88] sm:$0xff]
  %v812 = vld [vmem:[%s793 + $0x90] sm:$0xff]
  %v813 = vld [vmem:[%s793 + $0x98] sm:$0xff]
  %v814 = vld [vmem:[%s793 + $0xa0] sm:$0xff]
  %v815 = vld [vmem:[%s793 + $0xa8] sm:$0xff]
  %v816 = vld [vmem:[%s793 + $0xb0] sm:$0xff]
  %v817 = vld [vmem:[%s793 + $0xb8] sm:$0xff]
  %v818 = vld [vmem:[%s793 + $0xc0] sm:$0xff]
  %v819 = vld [vmem:[%s793 + $0xc8] sm:$0xff]
  %v820 = vld [vmem:[%s793 + $0xd0] sm:$0xff]
  %v821 = vld [vmem:[%s793 + $0xd8] sm:$0xff]
  %v822 = vld [vmem:[%s793 + $0xe0] sm:$0xff]
  %v823 = vld [vmem:[%s793 + $0xe8] sm:$0xff]
  %v824 = vld [vmem:[%s793 + $0xf0] sm:$0xff]
  %v825 = vld [vmem:[%s793 + $0xf8] sm:$0xff]
  %v826 = vld [vmem:[%s793 + $0x100] sm:$0xff]
  %v827 = vld [vmem:[%s793 + $0x108] sm:$0xff]
  %v828 = vld [vmem:[%s793 + $0x110] sm:$0xff]
  %v829 = vld [vmem:[%s793 + $0x118] sm:$0xff]
  %v830 = vld [vmem:[%s793 + $0x120] sm:$0xff]
  %v831 = vld [vmem:[%s793 + $0x128] sm:$0xff]
  %v832 = vld [vmem:[%s793 + $0x130] sm:$0xff]
  %v833 = vld [vmem:[%s793 + $0x138] sm:$0xff]
  %v834 = vld [vmem:[%s793 + $0x140] sm:$0xff]
  %v835 = vld [vmem:[%s793 + $0x148] sm:$0xff]
  %v836 = vld [vmem:[%s793 + $0x150] sm:$0xff]
  %v837 = vld [vmem:[%s793 + $0x158] sm:$0xff]
  %v838 = vld [vmem:[%s793 + $0x160] sm:$0xff]
  %v839 = vld [vmem:[%s793 + $0x168] sm:$0xff]
  %v840 = vld [vmem:[%s793 + $0x170] sm:$0xff]
  %v841 = vld [vmem:[%s793 + $0x178] sm:$0xff]
  %v842 = vld [vmem:[%s793 + $0x180] sm:$0xff]
  %v844 = vsel %vm67, %v794, 0
  %v847 = vsel %vm67, %v795, 0
  %v850 = vsel %vm67, %v796, 0
  %v853 = vsel %vm67, %v797, 0
  %v856 = vsel %vm67, %v798, 0
  %v859 = vsel %vm67, %v799, 0
  %v862 = vsel %vm67, %v800, 0
  %v865 = vsel %vm67, %v801, 0
  %v868 = vsel %vm67, %v802, 0
  %v871 = vsel %vm67, %v803, 0
  %v874 = vsel %vm67, %v804, 0
  %v877 = vsel %vm67, %v805, 0
  %v880 = vsel %vm67, %v806, 0
  %v883 = vsel %vm67, %v807, 0
  %v886 = vsel %vm67, %v808, 0
  %v889 = vsel %vm67, %v809, 0
  %v892 = vsel %vm67, %v810, 0
  %v895 = vsel %vm67, %v811, 0
  %v898 = vsel %vm67, %v812, 0
  %v901 = vsel %vm67, %v813, 0
  %v904 = vsel %vm67, %v814, 0
  %v907 = vsel %vm67, %v815, 0
  %v910 = vsel %vm67, %v816, 0
  %v913 = vsel %vm67, %v817, 0
  %v916 = vsel %vm67, %v818, 0
  %v919 = vsel %vm67, %v819, 0
  %v922 = vsel %vm67, %v820, 0
  %v925 = vsel %vm67, %v821, 0
  %v928 = vsel %vm67, %v822, 0
  %v931 = vsel %vm67, %v823, 0
  %v934 = vsel %vm67, %v824, 0
  %v937 = vsel %vm67, %v825, 0
  %v940 = vsel %vm67, %v826, 0
  %v943 = vsel %vm67, %v827, 0
  %v946 = vsel %vm67, %v828, 0
  %v949 = vsel %vm67, %v829, 0
  %v952 = vsel %vm67, %v830, 0
  %v955 = vsel %vm67, %v831, 0
  %v958 = vsel %vm67, %v832, 0
  %v961 = vsel %vm67, %v833, 0
  %v964 = vsel %vm67, %v834, 0
  %v967 = vsel %vm67, %v835, 0
  %v970 = vsel %vm67, %v836, 0
  %v973 = vsel %vm67, %v837, 0
  %v976 = vsel %vm67, %v838, 0
  %v979 = vsel %vm67, %v839, 0
  %v982 = vsel %vm67, %v840, 0
  %v985 = vsel %vm67, %v841, 0
  %v988 = vsel %vm67, %v842, 0
  %990 = vmatpush.msra.mxu0 0.0
  %991 = vmatpush.msra.mxu0 0.0
  %992 = vmatpush.msra.mxu0 0.0
  %993 = vmatpush.msra.mxu0 0.0
  %994 = vmatpush.msra.mxu0 0.0
  %995 = vmatpush.msra.mxu0 0.0
  %996 = vmatpush.msra.mxu0 0.0
  %997 = vmatpush.msra.mxu0 0.0
  %998 = vmatpush.msra.mxu0 0.0
  %999 = vmatpush.msra.mxu0 0.0
  %1000 = vmatpush.msra.mxu0 0.0
  %1001 = vmatpush.msra.mxu0 0.0
  %1002 = vmatpush.msra.mxu0 %v217
  %1003 = vmatpush.msra.mxu0 %v65
  %1004 = vmatpush.msra.mxu0 %v64
  %1005 = vmatpush.msra.mxu0 %v63
  %1006 = vmatmul.f32.gmra.mxu0 %v844
  %v1007 = vpop.f32.mrf.mxu0
  %v1008 = vadd.f32 0.0, %v1007
  %1009 = vmatmul.f32.gmra.mxu0 %v847
  %v1010 = vpop.f32.mrf.mxu0
  %v1011 = vadd.f32 0.0, %v1010
  %1012 = vmatmul.f32.gmra.mxu0 %v850
  %v1013 = vpop.f32.mrf.mxu0
  %v1014 = vadd.f32 0.0, %v1013
  %1015 = vmatmul.f32.gmra.mxu0 %v853
  %v1016 = vpop.f32.mrf.mxu0
  %v1017 = vadd.f32 0.0, %v1016
  %1018 = vmatmul.f32.gmra.mxu0 %v856
  %v1019 = vpop.f32.mrf.mxu0
  %v1020 = vadd.f32 0.0, %v1019
  %1021 = vmatmul.f32.gmra.mxu0 %v859
  %v1022 = vpop.f32.mrf.mxu0
  %v1023 = vadd.f32 0.0, %v1022
  %1024 = vmatmul.f32.gmra.mxu0 %v862
  %v1025 = vpop.f32.mrf.mxu0
  %v1026 = vadd.f32 0.0, %v1025
  %1027 = vmatmul.f32.gmra.mxu0 %v865
  %v1028 = vpop.f32.mrf.mxu0
  %v1029 = vadd.f32 0.0, %v1028
  %1030 = vmatmul.f32.gmra.mxu0 %v868
  %v1031 = vpop.f32.mrf.mxu0
  %v1032 = vadd.f32 0.0, %v1031
  %1033 = vmatmul.f32.gmra.mxu0 %v871
  %v1034 = vpop.f32.mrf.mxu0
  %v1035 = vadd.f32 0.0, %v1034
  %1036 = vmatmul.f32.gmra.mxu0 %v874
  %v1037 = vpop.f32.mrf.mxu0
  %v1038 = vadd.f32 0.0, %v1037
  %1039 = vmatmul.f32.gmra.mxu0 %v877
  %v1040 = vpop.f32.mrf.mxu0
  %v1041 = vadd.f32 0.0, %v1040
  %1042 = vmatmul.f32.gmra.mxu0 %v880
  %v1043 = vpop.f32.mrf.mxu0
  %v1044 = vadd.f32 0.0, %v1043
  %1045 = vmatmul.f32.gmra.mxu0 %v883
  %v1046 = vpop.f32.mrf.mxu0
  %v1047 = vadd.f32 0.0, %v1046
  %1048 = vmatmul.f32.gmra.mxu0 %v886
  %v1049 = vpop.f32.mrf.mxu0
  %v1050 = vadd.f32 0.0, %v1049
  %1051 = vmatmul.f32.gmra.mxu0 %v889
  %v1052 = vpop.f32.mrf.mxu0
  %v1053 = vadd.f32 0.0, %v1052
  %1054 = vmatmul.f32.gmra.mxu0 %v892
  %v1055 = vpop.f32.mrf.mxu0
  %v1056 = vadd.f32 0.0, %v1055
  %1057 = vmatmul.f32.gmra.mxu0 %v895
  %v1058 = vpop.f32.mrf.mxu0
  %v1059 = vadd.f32 0.0, %v1058
  %1060 = vmatmul.f32.gmra.mxu0 %v898
  %v1061 = vpop.f32.mrf.mxu0
  %v1062 = vadd.f32 0.0, %v1061
  %1063 = vmatmul.f32.gmra.mxu0 %v901
  %v1064 = vpop.f32.mrf.mxu0
  %v1065 = vadd.f32 0.0, %v1064
  %1066 = vmatmul.f32.gmra.mxu0 %v904
  %v1067 = vpop.f32.mrf.mxu0
  %v1068 = vadd.f32 0.0, %v1067
  %1069 = vmatmul.f32.gmra.mxu0 %v907
  %v1070 = vpop.f32.mrf.mxu0
  %v1071 = vadd.f32 0.0, %v1070
  %1072 = vmatmul.f32.gmra.mxu0 %v910
  %v1073 = vpop.f32.mrf.mxu0
  %v1074 = vadd.f32 0.0, %v1073
  %1075 = vmatmul.f32.gmra.mxu0 %v913
  %v1076 = vpop.f32.mrf.mxu0
  %v1077 = vadd.f32 0.0, %v1076
  %1078 = vmatmul.f32.gmra.mxu0 %v916
  %v1079 = vpop.f32.mrf.mxu0
  %v1080 = vadd.f32 0.0, %v1079
  %1081 = vmatmul.f32.gmra.mxu0 %v919
  %v1082 = vpop.f32.mrf.mxu0
  %v1083 = vadd.f32 0.0, %v1082
  %1084 = vmatmul.f32.gmra.mxu0 %v922
  %v1085 = vpop.f32.mrf.mxu0
  %v1086 = vadd.f32 0.0, %v1085
  %1087 = vmatmul.f32.gmra.mxu0 %v925
  %v1088 = vpop.f32.mrf.mxu0
  %v1089 = vadd.f32 0.0, %v1088
  %1090 = vmatmul.f32.gmra.mxu0 %v928
  %v1091 = vpop.f32.mrf.mxu0
  %v1092 = vadd.f32 0.0, %v1091
  %1093 = vmatmul.f32.gmra.mxu0 %v931
  %v1094 = vpop.f32.mrf.mxu0
  %v1095 = vadd.f32 0.0, %v1094
  %1096 = vmatmul.f32.gmra.mxu0 %v934
  %v1097 = vpop.f32.mrf.mxu0
  %v1098 = vadd.f32 0.0, %v1097
  %1099 = vmatmul.f32.gmra.mxu0 %v937
  %v1100 = vpop.f32.mrf.mxu0
  %v1101 = vadd.f32 0.0, %v1100
  %1102 = vmatmul.f32.gmra.mxu0 %v940
  %v1103 = vpop.f32.mrf.mxu0
  %v1104 = vadd.f32 0.0, %v1103
  %1105 = vmatmul.f32.gmra.mxu0 %v943
  %v1106 = vpop.f32.mrf.mxu0
  %v1107 = vadd.f32 0.0, %v1106
  %1108 = vmatmul.f32.gmra.mxu0 %v946
  %v1109 = vpop.f32.mrf.mxu0
  %v1110 = vadd.f32 0.0, %v1109
  %1111 = vmatmul.f32.gmra.mxu0 %v949
  %v1112 = vpop.f32.mrf.mxu0
  %v1113 = vadd.f32 0.0, %v1112
  %1114 = vmatmul.f32.gmra.mxu0 %v952
  %v1115 = vpop.f32.mrf.mxu0
  %v1116 = vadd.f32 0.0, %v1115
  %1117 = vmatmul.f32.gmra.mxu0 %v955
  %v1118 = vpop.f32.mrf.mxu0
  %v1119 = vadd.f32 0.0, %v1118
  %1120 = vmatmul.f32.gmra.mxu0 %v958
  %v1121 = vpop.f32.mrf.mxu0
  %v1122 = vadd.f32 0.0, %v1121
  %1123 = vmatmul.f32.gmra.mxu0 %v961
  %v1124 = vpop.f32.mrf.mxu0
  %v1125 = vadd.f32 0.0, %v1124
  %1126 = vmatmul.f32.gmra.mxu0 %v964
  %v1127 = vpop.f32.mrf.mxu0
  %v1128 = vadd.f32 0.0, %v1127
  %1129 = vmatmul.f32.gmra.mxu0 %v967
  %v1130 = vpop.f32.mrf.mxu0
  %v1131 = vadd.f32 0.0, %v1130
  %1132 = vmatmul.f32.gmra.mxu0 %v970
  %v1133 = vpop.f32.mrf.mxu0
  %v1134 = vadd.f32 0.0, %v1133
  %1135 = vmatmul.f32.gmra.mxu0 %v973
  %v1136 = vpop.f32.mrf.mxu0
  %v1137 = vadd.f32 0.0, %v1136
  %1138 = vmatmul.f32.gmra.mxu0 %v976
  %v1139 = vpop.f32.mrf.mxu0
  %v1140 = vadd.f32 0.0, %v1139
  %1141 = vmatmul.f32.gmra.mxu0 %v979
  %v1142 = vpop.f32.mrf.mxu0
  %v1143 = vadd.f32 0.0, %v1142
  %1144 = vmatmul.f32.gmra.mxu0 %v982
  %v1145 = vpop.f32.mrf.mxu0
  %v1146 = vadd.f32 0.0, %v1145
  %1147 = vmatmul.f32.gmra.mxu0 %v985
  %v1148 = vpop.f32.mrf.mxu0
  %v1149 = vadd.f32 0.0, %v1148
  %1150 = vmatmul.f32.gmra.mxu0 %v988
  %v1151 = vpop.f32.mrf.mxu0
  %v1152 = vadd.f32 0.0, %v1151
  %1153 = vdwg.mxu0
  %v1154 = vmax.f32 %v744, %v1008
  %v1155 = vmax.f32 %v745, %v1011
  %v1156 = vmax.f32 %v746, %v1014
  %v1157 = vmax.f32 %v747, %v1017
  %v1158 = vmax.f32 %v748, %v1020
  %v1159 = vmax.f32 %v749, %v1023
  %v1160 = vmax.f32 %v750, %v1026
  %v1161 = vmax.f32 %v751, %v1029
  %v1162 = vmax.f32 %v752, %v1032
  %v1163 = vmax.f32 %v753, %v1035
  %v1164 = vmax.f32 %v754, %v1038
  %v1165 = vmax.f32 %v755, %v1041
  %v1166 = vmax.f32 %v756, %v1044
  %v1167 = vmax.f32 %v757, %v1047
  %v1168 = vmax.f32 %v758, %v1050
  %v1169 = vmax.f32 %v759, %v1053
  %v1170 = vmax.f32 %v760, %v1056
  %v1171 = vmax.f32 %v761, %v1059
  %v1172 = vmax.f32 %v762, %v1062
  %v1173 = vmax.f32 %v763, %v1065
  %v1174 = vmax.f32 %v764, %v1068
  %v1175 = vmax.f32 %v765, %v1071
  %v1176 = vmax.f32 %v766, %v1074
  %v1177 = vmax.f32 %v767, %v1077
  %v1178 = vmax.f32 %v768, %v1080
  %v1179 = vmax.f32 %v769, %v1083
  %v1180 = vmax.f32 %v770, %v1086
  %v1181 = vmax.f32 %v771, %v1089
  %v1182 = vmax.f32 %v772, %v1092
  %v1183 = vmax.f32 %v773, %v1095
  %v1184 = vmax.f32 %v774, %v1098
  %v1185 = vmax.f32 %v775, %v1101
  %v1186 = vmax.f32 %v776, %v1104
  %v1187 = vmax.f32 %v777, %v1107
  %v1188 = vmax.f32 %v778, %v1110
  %v1189 = vmax.f32 %v779, %v1113
  %v1190 = vmax.f32 %v780, %v1116
  %v1191 = vmax.f32 %v781, %v1119
  %v1192 = vmax.f32 %v782, %v1122
  %v1193 = vmax.f32 %v783, %v1125
  %v1194 = vmax.f32 %v784, %v1128
  %v1195 = vmax.f32 %v785, %v1131
  %v1196 = vmax.f32 %v786, %v1134
  %v1197 = vmax.f32 %v787, %v1137
  %v1198 = vmax.f32 %v788, %v1140
  %v1199 = vmax.f32 %v789, %v1143
  %v1200 = vmax.f32 %v790, %v1146
  %v1201 = vmax.f32 %v791, %v1149
  %v1202 = vmax.f32 %v792, %v1152
  %s1203 = scalar_lea.vmem %s0, 1176
  %v1204 = vld [vmem:[%s1203] sm:$0xff]
  %v1205 = vld [vmem:[%s1203 + $0x8] sm:$0xff]
  %v1206 = vld [vmem:[%s1203 + $0x10] sm:$0xff]
  %v1207 = vld [vmem:[%s1203 + $0x18] sm:$0xff]
  %v1208 = vld [vmem:[%s1203 + $0x20] sm:$0xff]
  %v1209 = vld [vmem:[%s1203 + $0x28] sm:$0xff]
  %v1210 = vld [vmem:[%s1203 + $0x30] sm:$0xff]
  %v1211 = vld [vmem:[%s1203 + $0x38] sm:$0xff]
  %v1212 = vld [vmem:[%s1203 + $0x40] sm:$0xff]
  %v1213 = vld [vmem:[%s1203 + $0x48] sm:$0xff]
  %v1214 = vld [vmem:[%s1203 + $0x50] sm:$0xff]
  %v1215 = vld [vmem:[%s1203 + $0x58] sm:$0xff]
  %v1216 = vld [vmem:[%s1203 + $0x60] sm:$0xff]
  %v1217 = vld [vmem:[%s1203 + $0x68] sm:$0xff]
  %v1218 = vld [vmem:[%s1203 + $0x70] sm:$0xff]
  %v1219 = vld [vmem:[%s1203 + $0x78] sm:$0xff]
  %v1220 = vld [vmem:[%s1203 + $0x80] sm:$0xff]
  %v1221 = vld [vmem:[%s1203 + $0x88] sm:$0xff]
  %v1222 = vld [vmem:[%s1203 + $0x90] sm:$0xff]
  %v1223 = vld [vmem:[%s1203 + $0x98] sm:$0xff]
  %v1224 = vld [vmem:[%s1203 + $0xa0] sm:$0xff]
  %v1225 = vld [vmem:[%s1203 + $0xa8] sm:$0xff]
  %v1226 = vld [vmem:[%s1203 + $0xb0] sm:$0xff]
  %v1227 = vld [vmem:[%s1203 + $0xb8] sm:$0xff]
  %v1228 = vld [vmem:[%s1203 + $0xc0] sm:$0xff]
  %v1229 = vld [vmem:[%s1203 + $0xc8] sm:$0xff]
  %v1230 = vld [vmem:[%s1203 + $0xd0] sm:$0xff]
  %v1231 = vld [vmem:[%s1203 + $0xd8] sm:$0xff]
  %v1232 = vld [vmem:[%s1203 + $0xe0] sm:$0xff]
  %v1233 = vld [vmem:[%s1203 + $0xe8] sm:$0xff]
  %v1234 = vld [vmem:[%s1203 + $0xf0] sm:$0xff]
  %v1235 = vld [vmem:[%s1203 + $0xf8] sm:$0xff]
  %v1236 = vld [vmem:[%s1203 + $0x100] sm:$0xff]
  %v1237 = vld [vmem:[%s1203 + $0x108] sm:$0xff]
  %v1238 = vld [vmem:[%s1203 + $0x110] sm:$0xff]
  %v1239 = vld [vmem:[%s1203 + $0x118] sm:$0xff]
  %v1240 = vld [vmem:[%s1203 + $0x120] sm:$0xff]
  %v1241 = vld [vmem:[%s1203 + $0x128] sm:$0xff]
  %v1242 = vld [vmem:[%s1203 + $0x130] sm:$0xff]
  %v1243 = vld [vmem:[%s1203 + $0x138] sm:$0xff]
  %v1244 = vld [vmem:[%s1203 + $0x140] sm:$0xff]
  %v1245 = vld [vmem:[%s1203 + $0x148] sm:$0xff]
  %v1246 = vld [vmem:[%s1203 + $0x150] sm:$0xff]
  %v1247 = vld [vmem:[%s1203 + $0x158] sm:$0xff]
  %v1248 = vld [vmem:[%s1203 + $0x160] sm:$0xff]
  %v1249 = vld [vmem:[%s1203 + $0x168] sm:$0xff]
  %v1250 = vld [vmem:[%s1203 + $0x170] sm:$0xff]
  %v1251 = vld [vmem:[%s1203 + $0x178] sm:$0xff]
  %v1252 = vld [vmem:[%s1203 + $0x180] sm:$0xff]
  %v1254 = vsel %vm67, %v1204, 0
  %v1257 = vsel %vm67, %v1205, 0
  %v1260 = vsel %vm67, %v1206, 0
  %v1263 = vsel %vm67, %v1207, 0
  %v1266 = vsel %vm67, %v1208, 0
  %v1269 = vsel %vm67, %v1209, 0
  %v1272 = vsel %vm67, %v1210, 0
  %v1275 = vsel %vm67, %v1211, 0
  %v1278 = vsel %vm67, %v1212, 0
  %v1281 = vsel %vm67, %v1213, 0
  %v1284 = vsel %vm67, %v1214, 0
  %v1287 = vsel %vm67, %v1215, 0
  %v1290 = vsel %vm67, %v1216, 0
  %v1293 = vsel %vm67, %v1217, 0
  %v1296 = vsel %vm67, %v1218, 0
  %v1299 = vsel %vm67, %v1219, 0
  %v1302 = vsel %vm67, %v1220, 0
  %v1305 = vsel %vm67, %v1221, 0
  %v1308 = vsel %vm67, %v1222, 0
  %v1311 = vsel %vm67, %v1223, 0
  %v1314 = vsel %vm67, %v1224, 0
  %v1317 = vsel %vm67, %v1225, 0
  %v1320 = vsel %vm67, %v1226, 0
  %v1323 = vsel %vm67, %v1227, 0
  %v1326 = vsel %vm67, %v1228, 0
  %v1329 = vsel %vm67, %v1229, 0
  %v1332 = vsel %vm67, %v1230, 0
  %v1335 = vsel %vm67, %v1231, 0
  %v1338 = vsel %vm67, %v1232, 0
  %v1341 = vsel %vm67, %v1233, 0
  %v1344 = vsel %vm67, %v1234, 0
  %v1347 = vsel %vm67, %v1235, 0
  %v1350 = vsel %vm67, %v1236, 0
  %v1353 = vsel %vm67, %v1237, 0
  %v1356 = vsel %vm67, %v1238, 0
  %v1359 = vsel %vm67, %v1239, 0
  %v1362 = vsel %vm67, %v1240, 0
  %v1365 = vsel %vm67, %v1241, 0
  %v1368 = vsel %vm67, %v1242, 0
  %v1371 = vsel %vm67, %v1243, 0
  %v1374 = vsel %vm67, %v1244, 0
  %v1377 = vsel %vm67, %v1245, 0
  %v1380 = vsel %vm67, %v1246, 0
  %v1383 = vsel %vm67, %v1247, 0
  %v1386 = vsel %vm67, %v1248, 0
  %v1389 = vsel %vm67, %v1249, 0
  %v1392 = vsel %vm67, %v1250, 0
  %v1395 = vsel %vm67, %v1251, 0
  %v1398 = vsel %vm67, %v1252, 0
  %1400 = vmatpush.msra.mxu0 0.0
  %1401 = vmatpush.msra.mxu0 0.0
  %1402 = vmatpush.msra.mxu0 0.0
  %1403 = vmatpush.msra.mxu0 0.0
  %1404 = vmatpush.msra.mxu0 0.0
  %1405 = vmatpush.msra.mxu0 0.0
  %1406 = vmatpush.msra.mxu0 0.0
  %1407 = vmatpush.msra.mxu0 0.0
  %1408 = vmatpush.msra.mxu0 0.0
  %1409 = vmatpush.msra.mxu0 0.0
  %1410 = vmatpush.msra.mxu0 0.0
  %1411 = vmatpush.msra.mxu0 0.0
  %1412 = vmatpush.msra.mxu0 %v217
  %1413 = vmatpush.msra.mxu0 %v65
  %1414 = vmatpush.msra.mxu0 %v64
  %1415 = vmatpush.msra.mxu0 %v63
  %1416 = vmatmul.f32.gmra.mxu0 %v1254
  %v1417 = vpop.f32.mrf.mxu0
  %v1418 = vadd.f32 0.0, %v1417
  %1419 = vmatmul.f32.gmra.mxu0 %v1257
  %v1420 = vpop.f32.mrf.mxu0
  %v1421 = vadd.f32 0.0, %v1420
  %1422 = vmatmul.f32.gmra.mxu0 %v1260
  %v1423 = vpop.f32.mrf.mxu0
  %v1424 = vadd.f32 0.0, %v1423
  %1425 = vmatmul.f32.gmra.mxu0 %v1263
  %v1426 = vpop.f32.mrf.mxu0
  %v1427 = vadd.f32 0.0, %v1426
  %1428 = vmatmul.f32.gmra.mxu0 %v1266
  %v1429 = vpop.f32.mrf.mxu0
  %v1430 = vadd.f32 0.0, %v1429
  %1431 = vmatmul.f32.gmra.mxu0 %v1269
  %v1432 = vpop.f32.mrf.mxu0
  %v1433 = vadd.f32 0.0, %v1432
  %1434 = vmatmul.f32.gmra.mxu0 %v1272
  %v1435 = vpop.f32.mrf.mxu0
  %v1436 = vadd.f32 0.0, %v1435
  %1437 = vmatmul.f32.gmra.mxu0 %v1275
  %v1438 = vpop.f32.mrf.mxu0
  %v1439 = vadd.f32 0.0, %v1438
  %1440 = vmatmul.f32.gmra.mxu0 %v1278
  %v1441 = vpop.f32.mrf.mxu0
  %v1442 = vadd.f32 0.0, %v1441
  %1443 = vmatmul.f32.gmra.mxu0 %v1281
  %v1444 = vpop.f32.mrf.mxu0
  %v1445 = vadd.f32 0.0, %v1444
  %1446 = vmatmul.f32.gmra.mxu0 %v1284
  %v1447 = vpop.f32.mrf.mxu0
  %v1448 = vadd.f32 0.0, %v1447
  %1449 = vmatmul.f32.gmra.mxu0 %v1287
  %v1450 = vpop.f32.mrf.mxu0
  %v1451 = vadd.f32 0.0, %v1450
  %1452 = vmatmul.f32.gmra.mxu0 %v1290
  %v1453 = vpop.f32.mrf.mxu0
  %v1454 = vadd.f32 0.0, %v1453
  %1455 = vmatmul.f32.gmra.mxu0 %v1293
  %v1456 = vpop.f32.mrf.mxu0
  %v1457 = vadd.f32 0.0, %v1456
  %1458 = vmatmul.f32.gmra.mxu0 %v1296
  %v1459 = vpop.f32.mrf.mxu0
  %v1460 = vadd.f32 0.0, %v1459
  %1461 = vmatmul.f32.gmra.mxu0 %v1299
  %v1462 = vpop.f32.mrf.mxu0
  %v1463 = vadd.f32 0.0, %v1462
  %1464 = vmatmul.f32.gmra.mxu0 %v1302
  %v1465 = vpop.f32.mrf.mxu0
  %v1466 = vadd.f32 0.0, %v1465
  %1467 = vmatmul.f32.gmra.mxu0 %v1305
  %v1468 = vpop.f32.mrf.mxu0
  %v1469 = vadd.f32 0.0, %v1468
  %1470 = vmatmul.f32.gmra.mxu0 %v1308
  %v1471 = vpop.f32.mrf.mxu0
  %v1472 = vadd.f32 0.0, %v1471
  %1473 = vmatmul.f32.gmra.mxu0 %v1311
  %v1474 = vpop.f32.mrf.mxu0
  %v1475 = vadd.f32 0.0, %v1474
  %1476 = vmatmul.f32.gmra.mxu0 %v1314
  %v1477 = vpop.f32.mrf.mxu0
  %v1478 = vadd.f32 0.0, %v1477
  %1479 = vmatmul.f32.gmra.mxu0 %v1317
  %v1480 = vpop.f32.mrf.mxu0
  %v1481 = vadd.f32 0.0, %v1480
  %1482 = vmatmul.f32.gmra.mxu0 %v1320
  %v1483 = vpop.f32.mrf.mxu0
  %v1484 = vadd.f32 0.0, %v1483
  %1485 = vmatmul.f32.gmra.mxu0 %v1323
  %v1486 = vpop.f32.mrf.mxu0
  %v1487 = vadd.f32 0.0, %v1486
  %1488 = vmatmul.f32.gmra.mxu0 %v1326
  %v1489 = vpop.f32.mrf.mxu0
  %v1490 = vadd.f32 0.0, %v1489
  %1491 = vmatmul.f32.gmra.mxu0 %v1329
  %v1492 = vpop.f32.mrf.mxu0
  %v1493 = vadd.f32 0.0, %v1492
  %1494 = vmatmul.f32.gmra.mxu0 %v1332
  %v1495 = vpop.f32.mrf.mxu0
  %v1496 = vadd.f32 0.0, %v1495
  %1497 = vmatmul.f32.gmra.mxu0 %v1335
  %v1498 = vpop.f32.mrf.mxu0
  %v1499 = vadd.f32 0.0, %v1498
  %1500 = vmatmul.f32.gmra.mxu0 %v1338
  %v1501 = vpop.f32.mrf.mxu0
  %v1502 = vadd.f32 0.0, %v1501
  %1503 = vmatmul.f32.gmra.mxu0 %v1341
  %v1504 = vpop.f32.mrf.mxu0
  %v1505 = vadd.f32 0.0, %v1504
  %1506 = vmatmul.f32.gmra.mxu0 %v1344
  %v1507 = vpop.f32.mrf.mxu0
  %v1508 = vadd.f32 0.0, %v1507
  %1509 = vmatmul.f32.gmra.mxu0 %v1347
  %v1510 = vpop.f32.mrf.mxu0
  %v1511 = vadd.f32 0.0, %v1510
  %1512 = vmatmul.f32.gmra.mxu0 %v1350
  %v1513 = vpop.f32.mrf.mxu0
  %v1514 = vadd.f32 0.0, %v1513
  %1515 = vmatmul.f32.gmra.mxu0 %v1353
  %v1516 = vpop.f32.mrf.mxu0
  %v1517 = vadd.f32 0.0, %v1516
  %1518 = vmatmul.f32.gmra.mxu0 %v1356
  %v1519 = vpop.f32.mrf.mxu0
  %v1520 = vadd.f32 0.0, %v1519
  %1521 = vmatmul.f32.gmra.mxu0 %v1359
  %v1522 = vpop.f32.mrf.mxu0
  %v1523 = vadd.f32 0.0, %v1522
  %1524 = vmatmul.f32.gmra.mxu0 %v1362
  %v1525 = vpop.f32.mrf.mxu0
  %v1526 = vadd.f32 0.0, %v1525
  %1527 = vmatmul.f32.gmra.mxu0 %v1365
  %v1528 = vpop.f32.mrf.mxu0
  %v1529 = vadd.f32 0.0, %v1528
  %1530 = vmatmul.f32.gmra.mxu0 %v1368
  %v1531 = vpop.f32.mrf.mxu0
  %v1532 = vadd.f32 0.0, %v1531
  %1533 = vmatmul.f32.gmra.mxu0 %v1371
  %v1534 = vpop.f32.mrf.mxu0
  %v1535 = vadd.f32 0.0, %v1534
  %1536 = vmatmul.f32.gmra.mxu0 %v1374
  %v1537 = vpop.f32.mrf.mxu0
  %v1538 = vadd.f32 0.0, %v1537
  %1539 = vmatmul.f32.gmra.mxu0 %v1377
  %v1540 = vpop.f32.mrf.mxu0
  %v1541 = vadd.f32 0.0, %v1540
  %1542 = vmatmul.f32.gmra.mxu0 %v1380
  %v1543 = vpop.f32.mrf.mxu0
  %v1544 = vadd.f32 0.0, %v1543
  %1545 = vmatmul.f32.gmra.mxu0 %v1383
  %v1546 = vpop.f32.mrf.mxu0
  %v1547 = vadd.f32 0.0, %v1546
  %1548 = vmatmul.f32.gmra.mxu0 %v1386
  %v1549 = vpop.f32.mrf.mxu0
  %v1550 = vadd.f32 0.0, %v1549
  %1551 = vmatmul.f32.gmra.mxu0 %v1389
  %v1552 = vpop.f32.mrf.mxu0
  %v1553 = vadd.f32 0.0, %v1552
  %1554 = vmatmul.f32.gmra.mxu0 %v1392
  %v1555 = vpop.f32.mrf.mxu0
  %v1556 = vadd.f32 0.0, %v1555
  %1557 = vmatmul.f32.gmra.mxu0 %v1395
  %v1558 = vpop.f32.mrf.mxu0
  %v1559 = vadd.f32 0.0, %v1558
  %1560 = vmatmul.f32.gmra.mxu0 %v1398
  %v1561 = vpop.f32.mrf.mxu0
  %v1562 = vadd.f32 0.0, %v1561
  %1563 = vdwg.mxu0
  %v1564 = vmax.f32 %v1154, %v1418
  %v1565 = vmax.f32 %v1155, %v1421
  %v1566 = vmax.f32 %v1156, %v1424
  %v1567 = vmax.f32 %v1157, %v1427
  %v1568 = vmax.f32 %v1158, %v1430
  %v1569 = vmax.f32 %v1159, %v1433
  %v1570 = vmax.f32 %v1160, %v1436
  %v1571 = vmax.f32 %v1161, %v1439
  %v1572 = vmax.f32 %v1162, %v1442
  %v1573 = vmax.f32 %v1163, %v1445
  %v1574 = vmax.f32 %v1164, %v1448
  %v1575 = vmax.f32 %v1165, %v1451
  %v1576 = vmax.f32 %v1166, %v1454
  %v1577 = vmax.f32 %v1167, %v1457
  %v1578 = vmax.f32 %v1168, %v1460
  %v1579 = vmax.f32 %v1169, %v1463
  %v1580 = vmax.f32 %v1170, %v1466
  %v1581 = vmax.f32 %v1171, %v1469
  %v1582 = vmax.f32 %v1172, %v1472
  %v1583 = vmax.f32 %v1173, %v1475
  %v1584 = vmax.f32 %v1174, %v1478
  %v1585 = vmax.f32 %v1175, %v1481
  %v1586 = vmax.f32 %v1176, %v1484
  %v1587 = vmax.f32 %v1177, %v1487
  %v1588 = vmax.f32 %v1178, %v1490
  %v1589 = vmax.f32 %v1179, %v1493
  %v1590 = vmax.f32 %v1180, %v1496
  %v1591 = vmax.f32 %v1181, %v1499
  %v1592 = vmax.f32 %v1182, %v1502
  %v1593 = vmax.f32 %v1183, %v1505
  %v1594 = vmax.f32 %v1184, %v1508
  %v1595 = vmax.f32 %v1185, %v1511
  %v1596 = vmax.f32 %v1186, %v1514
  %v1597 = vmax.f32 %v1187, %v1517
  %v1598 = vmax.f32 %v1188, %v1520
  %v1599 = vmax.f32 %v1189, %v1523
  %v1600 = vmax.f32 %v1190, %v1526
  %v1601 = vmax.f32 %v1191, %v1529
  %v1602 = vmax.f32 %v1192, %v1532
  %v1603 = vmax.f32 %v1193, %v1535
  %v1604 = vmax.f32 %v1194, %v1538
  %v1605 = vmax.f32 %v1195, %v1541
  %v1606 = vmax.f32 %v1196, %v1544
  %v1607 = vmax.f32 %v1197, %v1547
  %v1608 = vmax.f32 %v1198, %v1550
  %v1609 = vmax.f32 %v1199, %v1553
  %v1610 = vmax.f32 %v1200, %v1556
  %v1611 = vmax.f32 %v1201, %v1559
  %v1612 = vmax.f32 %v1202, %v1562
  %v1613 = vld [vmem:[%s2] sm:$0x1]
  %v1615 = vperm.slane %v1613, 0
  %v1617 = vadd.f32 %v1564, %v1615
  %v1618 = vadd.f32 %v1565, %v1615
  %v1619 = vadd.f32 %v1566, %v1615
  %v1620 = vadd.f32 %v1567, %v1615
  %v1621 = vadd.f32 %v1568, %v1615
  %v1622 = vadd.f32 %v1569, %v1615
  %v1623 = vadd.f32 %v1570, %v1615
  %v1624 = vadd.f32 %v1571, %v1615
  %v1625 = vadd.f32 %v1572, %v1615
  %v1626 = vadd.f32 %v1573, %v1615
  %v1627 = vadd.f32 %v1574, %v1615
  %v1628 = vadd.f32 %v1575, %v1615
  %v1629 = vadd.f32 %v1576, %v1615
  %v1630 = vadd.f32 %v1577, %v1615
  %v1631 = vadd.f32 %v1578, %v1615
  %v1632 = vadd.f32 %v1579, %v1615
  %v1633 = vadd.f32 %v1580, %v1615
  %v1634 = vadd.f32 %v1581, %v1615
  %v1635 = vadd.f32 %v1582, %v1615
  %v1636 = vadd.f32 %v1583, %v1615
  %v1637 = vadd.f32 %v1584, %v1615
  %v1638 = vadd.f32 %v1585, %v1615
  %v1639 = vadd.f32 %v1586, %v1615
  %v1640 = vadd.f32 %v1587, %v1615
  %v1641 = vadd.f32 %v1588, %v1615
  %v1642 = vadd.f32 %v1589, %v1615
  %v1643 = vadd.f32 %v1590, %v1615
  %v1644 = vadd.f32 %v1591, %v1615
  %v1645 = vadd.f32 %v1592, %v1615
  %v1646 = vadd.f32 %v1593, %v1615
  %v1647 = vadd.f32 %v1594, %v1615
  %v1648 = vadd.f32 %v1595, %v1615
  %v1649 = vadd.f32 %v1596, %v1615
  %v1650 = vadd.f32 %v1597, %v1615
  %v1651 = vadd.f32 %v1598, %v1615
  %v1652 = vadd.f32 %v1599, %v1615
  %v1653 = vadd.f32 %v1600, %v1615
  %v1654 = vadd.f32 %v1601, %v1615
  %v1655 = vadd.f32 %v1602, %v1615
  %v1656 = vadd.f32 %v1603, %v1615
  %v1657 = vadd.f32 %v1604, %v1615
  %v1658 = vadd.f32 %v1605, %v1615
  %v1659 = vadd.f32 %v1606, %v1615
  %v1660 = vadd.f32 %v1607, %v1615
  %v1661 = vadd.f32 %v1608, %v1615
  %v1662 = vadd.f32 %v1609, %v1615
  %v1663 = vadd.f32 %v1610, %v1615
  %v1664 = vadd.f32 %v1611, %v1615
  %v1665 = vadd.f32 %v1612, %v1615
  %v1666 = vmax.f32 %v1617, 0.0
  %v1667 = vmax.f32 %v1618, 0.0
  %v1668 = vmax.f32 %v1619, 0.0
  %v1669 = vmax.f32 %v1620, 0.0
  %v1670 = vmax.f32 %v1621, 0.0
  %v1671 = vmax.f32 %v1622, 0.0
  %v1672 = vmax.f32 %v1623, 0.0
  %v1673 = vmax.f32 %v1624, 0.0
  %v1674 = vmax.f32 %v1625, 0.0
  %v1675 = vmax.f32 %v1626, 0.0
  %v1676 = vmax.f32 %v1627, 0.0
  %v1677 = vmax.f32 %v1628, 0.0
  %v1678 = vmax.f32 %v1629, 0.0
  %v1679 = vmax.f32 %v1630, 0.0
  %v1680 = vmax.f32 %v1631, 0.0
  %v1681 = vmax.f32 %v1632, 0.0
  %v1682 = vmax.f32 %v1633, 0.0
  %v1683 = vmax.f32 %v1634, 0.0
  %v1684 = vmax.f32 %v1635, 0.0
  %v1685 = vmax.f32 %v1636, 0.0
  %v1686 = vmax.f32 %v1637, 0.0
  %v1687 = vmax.f32 %v1638, 0.0
  %v1688 = vmax.f32 %v1639, 0.0
  %v1689 = vmax.f32 %v1640, 0.0
  %v1690 = vmax.f32 %v1641, 0.0
  %v1691 = vmax.f32 %v1642, 0.0
  %v1692 = vmax.f32 %v1643, 0.0
  %v1693 = vmax.f32 %v1644, 0.0
  %v1694 = vmax.f32 %v1645, 0.0
  %v1695 = vmax.f32 %v1646, 0.0
  %v1696 = vmax.f32 %v1647, 0.0
  %v1697 = vmax.f32 %v1648, 0.0
  %v1698 = vmax.f32 %v1649, 0.0
  %v1699 = vmax.f32 %v1650, 0.0
  %v1700 = vmax.f32 %v1651, 0.0
  %v1701 = vmax.f32 %v1652, 0.0
  %v1702 = vmax.f32 %v1653, 0.0
  %v1703 = vmax.f32 %v1654, 0.0
  %v1704 = vmax.f32 %v1655, 0.0
  %v1705 = vmax.f32 %v1656, 0.0
  %v1706 = vmax.f32 %v1657, 0.0
  %v1707 = vmax.f32 %v1658, 0.0
  %v1708 = vmax.f32 %v1659, 0.0
  %v1709 = vmax.f32 %v1660, 0.0
  %v1710 = vmax.f32 %v1661, 0.0
  %v1711 = vmax.f32 %v1662, 0.0
  %v1712 = vmax.f32 %v1663, 0.0
  %v1713 = vmax.f32 %v1664, 0.0
  %v1714 = vmax.f32 %v1665, 0.0
  %1715 = vst [vmem:[%s3] sm:$0xff] %v1666
  %1716 = vst [vmem:[%s3 + $0x8] sm:$0xff] %v1667
  %1717 = vst [vmem:[%s3 + $0x10] sm:$0xff] %v1668
  %1718 = vst [vmem:[%s3 + $0x18] sm:$0xff] %v1669
  %1719 = vst [vmem:[%s3 + $0x20] sm:$0xff] %v1670
  %1720 = vst [vmem:[%s3 + $0x28] sm:$0xff] %v1671
  %1721 = vst [vmem:[%s3 + $0x30] sm:$0xff] %v1672
  %1722 = vst [vmem:[%s3 + $0x38] sm:$0xff] %v1673
  %1723 = vst [vmem:[%s3 + $0x40] sm:$0xff] %v1674
  %1724 = vst [vmem:[%s3 + $0x48] sm:$0xff] %v1675
  %1725 = vst [vmem:[%s3 + $0x50] sm:$0xff] %v1676
  %1726 = vst [vmem:[%s3 + $0x58] sm:$0xff] %v1677
  %1727 = vst [vmem:[%s3 + $0x60] sm:$0xff] %v1678
  %1728 = vst [vmem:[%s3 + $0x68] sm:$0xff] %v1679
  %1729 = vst [vmem:[%s3 + $0x70] sm:$0xff] %v1680
  %1730 = vst [vmem:[%s3 + $0x78] sm:$0xff] %v1681
  %1731 = vst [vmem:[%s3 + $0x80] sm:$0xff] %v1682
  %1732 = vst [vmem:[%s3 + $0x88] sm:$0xff] %v1683
  %1733 = vst [vmem:[%s3 + $0x90] sm:$0xff] %v1684
  %1734 = vst [vmem:[%s3 + $0x98] sm:$0xff] %v1685
  %1735 = vst [vmem:[%s3 + $0xa0] sm:$0xff] %v1686
  %1736 = vst [vmem:[%s3 + $0xa8] sm:$0xff] %v1687
  %1737 = vst [vmem:[%s3 + $0xb0] sm:$0xff] %v1688
  %1738 = vst [vmem:[%s3 + $0xb8] sm:$0xff] %v1689
  %1739 = vst [vmem:[%s3 + $0xc0] sm:$0xff] %v1690
  %1740 = vst [vmem:[%s3 + $0xc8] sm:$0xff] %v1691
  %1741 = vst [vmem:[%s3 + $0xd0] sm:$0xff] %v1692
  %1742 = vst [vmem:[%s3 + $0xd8] sm:$0xff] %v1693
  %1743 = vst [vmem:[%s3 + $0xe0] sm:$0xff] %v1694
  %1744 = vst [vmem:[%s3 + $0xe8] sm:$0xff] %v1695
  %1745 = vst [vmem:[%s3 + $0xf0] sm:$0xff] %v1696
  %1746 = vst [vmem:[%s3 + $0xf8] sm:$0xff] %v1697
  %1747 = vst [vmem:[%s3 + $0x100] sm:$0xff] %v1698
  %1748 = vst [vmem:[%s3 + $0x108] sm:$0xff] %v1699
  %1749 = vst [vmem:[%s3 + $0x110] sm:$0xff] %v1700
  %1750 = vst [vmem:[%s3 + $0x118] sm:$0xff] %v1701
  %1751 = vst [vmem:[%s3 + $0x120] sm:$0xff] %v1702
  %1752 = vst [vmem:[%s3 + $0x128] sm:$0xff] %v1703
  %1753 = vst [vmem:[%s3 + $0x130] sm:$0xff] %v1704
  %1754 = vst [vmem:[%s3 + $0x138] sm:$0xff] %v1705
  %1755 = vst [vmem:[%s3 + $0x140] sm:$0xff] %v1706
  %1756 = vst [vmem:[%s3 + $0x148] sm:$0xff] %v1707
  %1757 = vst [vmem:[%s3 + $0x150] sm:$0xff] %v1708
  %1758 = vst [vmem:[%s3 + $0x158] sm:$0xff] %v1709
  %1759 = vst [vmem:[%s3 + $0x160] sm:$0xff] %v1710
  %1760 = vst [vmem:[%s3 + $0x168] sm:$0xff] %v1711
  %1761 = vst [vmem:[%s3 + $0x170] sm:$0xff] %v1712
  %1762 = vst [vmem:[%s3 + $0x178] sm:$0xff] %v1713
  %1763 = vst [vmem:[%s3 + $0x180] sm:$0xff] %v1714
  // Predicated region
  $region14: #{_lambda_.3} parent=0 // pred_check
    _
  $region15: #{_lambda_.3} parent=0 // pred_check_branch
    %1765 = sbr.rel (0) target = $region17
  $region16: #{_lambda_.3} parent=0 // pred_region
    _
  $region17: #{_lambda_.3} parent=0 // pred_fallthru
    _
  // Predicated region
  $region18: #{_lambda_.3} parent=0 // pred_check
    _
  $region19: #{_lambda_.3} parent=0 // pred_check_branch
    %1767 = sbr.rel (0) target = $region21
  $region20: #{_lambda_.3} parent=0 // pred_region
    _
  $region21: #{_lambda_.3} parent=0 // pred_fallthru
    _

// kernel: _lambda_.4
$region0: #{_lambda_.4}
  #allocation0 [shape = 'u32[]', space=smem, size = 0x4, offset = 0x4, fixed_abs, tag = 'smem constant byte address 0x4 - core index']
  #allocation1 [shape = 'u32[72,128]{1,0:T(1,128)}', space=vmem, size = 0x9000, scoped, tag = 'internal scratch']
  %s0 = inlined_call_operand.vmem [shape: f32[4,50,150], index: 0, kind: input, shape index: {}]
  %s1 = inlined_call_operand.vmem [shape: f32[150,128], index: 1, kind: input, shape index: {}]
  %s2 = inlined_call_operand.vmem [shape: f32[1,128], index: 2, kind: input, shape index: {}]
  %s3 = inlined_call_operand.vmem [shape: f32[50,128], index: 3, kind: output, shape index: {}]
  %s4 = sld [smem:[#allocation0]]
  $region22: #{_lambda_.4} parent=0
    _
  %s6 = ssub.s32 1, %s4
  %s7 = scalar_select 0, %s6, %s4
  // Predicated region
  $region2: #{_lambda_.4} parent=0 // pred_check
    _
  $region3: #{_lambda_.4} parent=0 // pred_check_branch
    %9 = sbr.rel (0) target = $region5
  $region4: #{_lambda_.4} parent=0 // pred_region
    _
  $region5: #{_lambda_.4} parent=0 // pred_fallthru
    _
  // Predicated region
  $region6: #{_lambda_.4} parent=0 // pred_check
    _
  $region7: #{_lambda_.4} parent=0 // pred_check_branch
    %11 = sbr.rel (0) target = $region9
  $region8: #{_lambda_.4} parent=0 // pred_region
    _
  $region9: #{_lambda_.4} parent=0 // pred_fallthru
    _
  // Predicated region
  $region10: #{_lambda_.4} parent=0 // pred_check
    _
  $region11: #{_lambda_.4} parent=0 // pred_check_branch
    %13 = sbr.rel (0) target = $region13
  $region12: #{_lambda_.4} parent=0 // pred_region
    _
  $region13: #{_lambda_.4} parent=0 // pred_fallthru
    _
  %v14 = vld [vmem:[%s0] sm:$0xff]
  %v15 = vld [vmem:[%s0 + $0x8] sm:$0xff]
  %v16 = vld [vmem:[%s0 + $0x10] sm:$0xff]
  %v17 = vld [vmem:[%s0 + $0x18] sm:$0xff]
  %v18 = vld [vmem:[%s0 + $0x20] sm:$0xff]
  %v19 = vld [vmem:[%s0 + $0x28] sm:$0xff]
  %v20 = vld [vmem:[%s0 + $0x30] sm:$0xff]
  %v21 = vld [vmem:[%s0 + $0x38] sm:$0xff]
  %v22 = vld [vmem:[%s0 + $0x40] sm:$0xff]
  %v23 = vld [vmem:[%s0 + $0x48] sm:$0xff]
  %v24 = vld [vmem:[%s0 + $0x50] sm:$0xff]
  %v25 = vld [vmem:[%s0 + $0x58] sm:$0xff]
  %v26 = vld [vmem:[%s0 + $0x60] sm:$0x3]
  %v27 = vld [vmem:[%s0 + $0x68] sm:$0x3]
  %v28 = vld [vmem:[%s1] sm:$0xff]
  %v29 = vld [vmem:[%s1 + $0x8] sm:$0xff]
  %v30 = vld [vmem:[%s1 + $0x10] sm:$0xff]
  %v31 = vld [vmem:[%s1 + $0x18] sm:$0xff]
  %v32 = vld [vmem:[%s1 + $0x20] sm:$0xff]
  %v33 = vld [vmem:[%s1 + $0x28] sm:$0xff]
  %v34 = vld [vmem:[%s1 + $0x30] sm:$0xff]
  %v35 = vld [vmem:[%s1 + $0x38] sm:$0xff]
  %v36 = vld [vmem:[%s1 + $0x40] sm:$0xff]
  %v37 = vld [vmem:[%s1 + $0x48] sm:$0xff]
  %v38 = vld [vmem:[%s1 + $0x50] sm:$0xff]
  %v39 = vld [vmem:[%s1 + $0x58] sm:$0xff]
  %v40 = vld [vmem:[%s1 + $0x60] sm:$0xff]
  %v41 = vld [vmem:[%s1 + $0x68] sm:$0xff]
  %v42 = vld [vmem:[%s1 + $0x70] sm:$0xff]
  %v43 = vld [vmem:[%s1 + $0x78] sm:$0xff]
  %v44 = vld [vmem:[%s1 + $0x80] sm:$0xff]
  %v45 = vld [vmem:[%s1 + $0x88] sm:$0xff]
  %v46 = vld [vmem:[%s1 + $0x90] sm:$0x3f]
  %vm47 = vcmask 179200
  %v49 = vsel %vm47, %v15, 0
  %v52 = vsel %vm47, %v17, 0
  %v55 = vsel %vm47, %v19, 0
  %v58 = vsel %vm47, %v21, 0
  %v61 = vsel %vm47, %v23, 0
  %v64 = vsel %vm47, %v25, 0
  %v67 = vsel %vm47, %v27, 0
  %vm69 = vcmask 1045504
  %v71 = vsel %vm69, %v46, 0
  %73 = vmatpush.msra.mxu0 %v43
  %74 = vmatpush.msra.mxu0 %v42
  %75 = vmatpush.msra.mxu0 %v41
  %76 = vmatpush.msra.mxu0 %v40
  %77 = vmatpush.msra.mxu0 %v39
  %78 = vmatpush.msra.mxu0 %v38
  %79 = vmatpush.msra.mxu0 %v37
  %80 = vmatpush.msra.mxu0 %v36
  %81 = vmatpush.msra.mxu0 %v35
  %82 = vmatpush.msra.mxu0 %v34
  %83 = vmatpush.msra.mxu0 %v33
  %84 = vmatpush.msra.mxu0 %v32
  %85 = vmatpush.msra.mxu0 %v31
  %86 = vmatpush.msra.mxu0 %v30
  %87 = vmatpush.msra.mxu0 %v29
  %88 = vmatpush.msra.mxu0 %v28
  %89 = vmatmul.f32.gmra.mxu0 %v14
  %v90 = vpop.f32.mrf.mxu0
  %v91 = vadd.f32 0.0, %v90
  %92 = vmatmul.f32.gmra.mxu0 %v16
  %v93 = vpop.f32.mrf.mxu0
  %v94 = vadd.f32 0.0, %v93
  %95 = vmatmul.f32.gmra.mxu0 %v18
  %v96 = vpop.f32.mrf.mxu0
  %v97 = vadd.f32 0.0, %v96
  %98 = vmatmul.f32.gmra.mxu0 %v20
  %v99 = vpop.f32.mrf.mxu0
  %v100 = vadd.f32 0.0, %v99
  %101 = vmatmul.f32.gmra.mxu0 %v22
  %v102 = vpop.f32.mrf.mxu0
  %v103 = vadd.f32 0.0, %v102
  %104 = vmatmul.f32.gmra.mxu0 %v24
  %v105 = vpop.f32.mrf.mxu0
  %v106 = vadd.f32 0.0, %v105
  %107 = vmatmul.f32.gmra.mxu0 %v26
  %v108 = vpop.f32.mrf.mxu0
  %v109 = vadd.f32 0.0, %v108
  %110 = vdwg.mxu0
  %111 = vmatpush.msra.mxu0 0.0
  %112 = vmatpush.msra.mxu0 0.0
  %113 = vmatpush.msra.mxu0 0.0
  %114 = vmatpush.msra.mxu0 0.0
  %115 = vmatpush.msra.mxu0 0.0
  %116 = vmatpush.msra.mxu0 0.0
  %117 = vmatpush.msra.mxu0 0.0
  %118 = vmatpush.msra.mxu0 0.0
  %119 = vmatpush.msra.mxu0 0.0
  %120 = vmatpush.msra.mxu0 0.0
  %121 = vmatpush.msra.mxu0 0.0
  %122 = vmatpush.msra.mxu0 0.0
  %123 = vmatpush.msra.mxu0 0.0
  %124 = vmatpush.msra.mxu0 %v71
  %125 = vmatpush.msra.mxu0 %v45
  %126 = vmatpush.msra.mxu0 %v44
  %127 = vmatmul.f32.gmra.mxu0 %v49
  %v128 = vpop.f32.mrf.mxu0
  %v129 = vadd.f32 %v91, %v128
  %130 = vmatmul.f32.gmra.mxu0 %v52
  %v131 = vpop.f32.mrf.mxu0
  %v132 = vadd.f32 %v94, %v131
  %133 = vmatmul.f32.gmra.mxu0 %v55
  %v134 = vpop.f32.mrf.mxu0
  %v135 = vadd.f32 %v97, %v134
  %136 = vmatmul.f32.gmra.mxu0 %v58
  %v137 = vpop.f32.mrf.mxu0
  %v138 = vadd.f32 %v100, %v137
  %139 = vmatmul.f32.gmra.mxu0 %v61
  %v140 = vpop.f32.mrf.mxu0
  %v141 = vadd.f32 %v103, %v140
  %142 = vmatmul.f32.gmra.mxu0 %v64
  %v143 = vpop.f32.mrf.mxu0
  %v144 = vadd.f32 %v106, %v143
  %145 = vmatmul.f32.gmra.mxu0 %v67
  %v146 = vpop.f32.mrf.mxu0
  %v147 = vadd.f32 %v109, %v146
  %148 = vdwg.mxu0
  %s149 = scalar_lea.vmem %s0, 112
  %v150 = vld [vmem:[%s149] sm:$0xff]
  %v151 = vld [vmem:[%s149 + $0x8] sm:$0xff]
  %v152 = vld [vmem:[%s149 + $0x10] sm:$0xff]
  %v153 = vld [vmem:[%s149 + $0x18] sm:$0xff]
  %v154 = vld [vmem:[%s149 + $0x20] sm:$0xff]
  %v155 = vld [vmem:[%s149 + $0x28] sm:$0xff]
  %v156 = vld [vmem:[%s149 + $0x30] sm:$0xff]
  %v157 = vld [vmem:[%s149 + $0x38] sm:$0xff]
  %v158 = vld [vmem:[%s149 + $0x40] sm:$0xff]
  %v159 = vld [vmem:[%s149 + $0x48] sm:$0xff]
  %v160 = vld [vmem:[%s149 + $0x50] sm:$0xff]
  %v161 = vld [vmem:[%s149 + $0x58] sm:$0xff]
  %v162 = vld [vmem:[%s149 + $0x60] sm:$0x3]
  %v163 = vld [vmem:[%s149 + $0x68] sm:$0x3]
  %v165 = vsel %vm47, %v151, 0
  %v168 = vsel %vm47, %v153, 0
  %v171 = vsel %vm47, %v155, 0
  %v174 = vsel %vm47, %v157, 0
  %v177 = vsel %vm47, %v159, 0
  %v180 = vsel %vm47, %v161, 0
  %v183 = vsel %vm47, %v163, 0
  %185 = vmatpush.msra.mxu0 %v43
  %186 = vmatpush.msra.mxu0 %v42
  %187 = vmatpush.msra.mxu0 %v41
  %188 = vmatpush.msra.mxu0 %v40
  %189 = vmatpush.msra.mxu0 %v39
  %190 = vmatpush.msra.mxu0 %v38
  %191 = vmatpush.msra.mxu0 %v37
  %192 = vmatpush.msra.mxu0 %v36
  %193 = vmatpush.msra.mxu0 %v35
  %194 = vmatpush.msra.mxu0 %v34
  %195 = vmatpush.msra.mxu0 %v33
  %196 = vmatpush.msra.mxu0 %v32
  %197 = vmatpush.msra.mxu0 %v31
  %198 = vmatpush.msra.mxu0 %v30
  %199 = vmatpush.msra.mxu0 %v29
  %200 = vmatpush.msra.mxu0 %v28
  %201 = vmatmul.f32.gmra.mxu0 %v150
  %v202 = vpop.f32.mrf.mxu0
  %v203 = vadd.f32 0.0, %v202
  %204 = vmatmul.f32.gmra.mxu0 %v152
  %v205 = vpop.f32.mrf.mxu0
  %v206 = vadd.f32 0.0, %v205
  %207 = vmatmul.f32.gmra.mxu0 %v154
  %v208 = vpop.f32.mrf.mxu0
  %v209 = vadd.f32 0.0, %v208
  %210 = vmatmul.f32.gmra.mxu0 %v156
  %v211 = vpop.f32.mrf.mxu0
  %v212 = vadd.f32 0.0, %v211
  %213 = vmatmul.f32.gmra.mxu0 %v158
  %v214 = vpop.f32.mrf.mxu0
  %v215 = vadd.f32 0.0, %v214
  %216 = vmatmul.f32.gmra.mxu0 %v160
  %v217 = vpop.f32.mrf.mxu0
  %v218 = vadd.f32 0.0, %v217
  %219 = vmatmul.f32.gmra.mxu0 %v162
  %v220 = vpop.f32.mrf.mxu0
  %v221 = vadd.f32 0.0, %v220
  %222 = vdwg.mxu0
  %223 = vmatpush.msra.mxu0 0.0
  %224 = vmatpush.msra.mxu0 0.0
  %225 = vmatpush.msra.mxu0 0.0
  %226 = vmatpush.msra.mxu0 0.0
  %227 = vmatpush.msra.mxu0 0.0
  %228 = vmatpush.msra.mxu0 0.0
  %229 = vmatpush.msra.mxu0 0.0
  %230 = vmatpush.msra.mxu0 0.0
  %231 = vmatpush.msra.mxu0 0.0
  %232 = vmatpush.msra.mxu0 0.0
  %233 = vmatpush.msra.mxu0 0.0
  %234 = vmatpush.msra.mxu0 0.0
  %235 = vmatpush.msra.mxu0 0.0
  %236 = vmatpush.msra.mxu0 %v71
  %237 = vmatpush.msra.mxu0 %v45
  %238 = vmatpush.msra.mxu0 %v44
  %239 = vmatmul.f32.gmra.mxu0 %v165
  %v240 = vpop.f32.mrf.mxu0
  %v241 = vadd.f32 %v203, %v240
  %242 = vmatmul.f32.gmra.mxu0 %v168
  %v243 = vpop.f32.mrf.mxu0
  %v244 = vadd.f32 %v206, %v243
  %245 = vmatmul.f32.gmra.mxu0 %v171
  %v246 = vpop.f32.mrf.mxu0
  %v247 = vadd.f32 %v209, %v246
  %248 = vmatmul.f32.gmra.mxu0 %v174
  %v249 = vpop.f32.mrf.mxu0
  %v250 = vadd.f32 %v212, %v249
  %251 = vmatmul.f32.gmra.mxu0 %v177
  %v252 = vpop.f32.mrf.mxu0
  %v253 = vadd.f32 %v215, %v252
  %254 = vmatmul.f32.gmra.mxu0 %v180
  %v255 = vpop.f32.mrf.mxu0
  %v256 = vadd.f32 %v218, %v255
  %257 = vmatmul.f32.gmra.mxu0 %v183
  %v258 = vpop.f32.mrf.mxu0
  %v259 = vadd.f32 %v221, %v258
  %260 = vdwg.mxu0
  %v261 = vmax.f32 %v129, %v241
  %v262 = vmax.f32 %v132, %v244
  %v263 = vmax.f32 %v135, %v247
  %v264 = vmax.f32 %v138, %v250
  %v265 = vmax.f32 %v141, %v253
  %v266 = vmax.f32 %v144, %v256
  %v267 = vmax.f32 %v147, %v259
  %s268 = scalar_lea.vmem %s0, 224
  %v269 = vld [vmem:[%s268] sm:$0xff]
  %v270 = vld [vmem:[%s268 + $0x8] sm:$0xff]
  %v271 = vld [vmem:[%s268 + $0x10] sm:$0xff]
  %v272 = vld [vmem:[%s268 + $0x18] sm:$0xff]
  %v273 = vld [vmem:[%s268 + $0x20] sm:$0xff]
  %v274 = vld [vmem:[%s268 + $0x28] sm:$0xff]
  %v275 = vld [vmem:[%s268 + $0x30] sm:$0xff]
  %v276 = vld [vmem:[%s268 + $0x38] sm:$0xff]
  %v277 = vld [vmem:[%s268 + $0x40] sm:$0xff]
  %v278 = vld [vmem:[%s268 + $0x48] sm:$0xff]
  %v279 = vld [vmem:[%s268 + $0x50] sm:$0xff]
  %v280 = vld [vmem:[%s268 + $0x58] sm:$0xff]
  %v281 = vld [vmem:[%s268 + $0x60] sm:$0x3]
  %v282 = vld [vmem:[%s268 + $0x68] sm:$0x3]
  %v284 = vsel %vm47, %v270, 0
  %v287 = vsel %vm47, %v272, 0
  %v290 = vsel %vm47, %v274, 0
  %v293 = vsel %vm47, %v276, 0
  %v296 = vsel %vm47, %v278, 0
  %v299 = vsel %vm47, %v280, 0
  %v302 = vsel %vm47, %v282, 0
  %304 = vmatpush.msra.mxu0 %v43
  %305 = vmatpush.msra.mxu0 %v42
  %306 = vmatpush.msra.mxu0 %v41
  %307 = vmatpush.msra.mxu0 %v40
  %308 = vmatpush.msra.mxu0 %v39
  %309 = vmatpush.msra.mxu0 %v38
  %310 = vmatpush.msra.mxu0 %v37
  %311 = vmatpush.msra.mxu0 %v36
  %312 = vmatpush.msra.mxu0 %v35
  %313 = vmatpush.msra.mxu0 %v34
  %314 = vmatpush.msra.mxu0 %v33
  %315 = vmatpush.msra.mxu0 %v32
  %316 = vmatpush.msra.mxu0 %v31
  %317 = vmatpush.msra.mxu0 %v30
  %318 = vmatpush.msra.mxu0 %v29
  %319 = vmatpush.msra.mxu0 %v28
  %320 = vmatmul.f32.gmra.mxu0 %v269
  %v321 = vpop.f32.mrf.mxu0
  %v322 = vadd.f32 0.0, %v321
  %323 = vmatmul.f32.gmra.mxu0 %v271
  %v324 = vpop.f32.mrf.mxu0
  %v325 = vadd.f32 0.0, %v324
  %326 = vmatmul.f32.gmra.mxu0 %v273
  %v327 = vpop.f32.mrf.mxu0
  %v328 = vadd.f32 0.0, %v327
  %329 = vmatmul.f32.gmra.mxu0 %v275
  %v330 = vpop.f32.mrf.mxu0
  %v331 = vadd.f32 0.0, %v330
  %332 = vmatmul.f32.gmra.mxu0 %v277
  %v333 = vpop.f32.mrf.mxu0
  %v334 = vadd.f32 0.0, %v333
  %335 = vmatmul.f32.gmra.mxu0 %v279
  %v336 = vpop.f32.mrf.mxu0
  %v337 = vadd.f32 0.0, %v336
  %338 = vmatmul.f32.gmra.mxu0 %v281
  %v339 = vpop.f32.mrf.mxu0
  %v340 = vadd.f32 0.0, %v339
  %341 = vdwg.mxu0
  %342 = vmatpush.msra.mxu0 0.0
  %343 = vmatpush.msra.mxu0 0.0
  %344 = vmatpush.msra.mxu0 0.0
  %345 = vmatpush.msra.mxu0 0.0
  %346 = vmatpush.msra.mxu0 0.0
  %347 = vmatpush.msra.mxu0 0.0
  %348 = vmatpush.msra.mxu0 0.0
  %349 = vmatpush.msra.mxu0 0.0
  %350 = vmatpush.msra.mxu0 0.0
  %351 = vmatpush.msra.mxu0 0.0
  %352 = vmatpush.msra.mxu0 0.0
  %353 = vmatpush.msra.mxu0 0.0
  %354 = vmatpush.msra.mxu0 0.0
  %355 = vmatpush.msra.mxu0 %v71
  %356 = vmatpush.msra.mxu0 %v45
  %357 = vmatpush.msra.mxu0 %v44
  %358 = vmatmul.f32.gmra.mxu0 %v284
  %v359 = vpop.f32.mrf.mxu0
  %v360 = vadd.f32 %v322, %v359
  %361 = vmatmul.f32.gmra.mxu0 %v287
  %v362 = vpop.f32.mrf.mxu0
  %v363 = vadd.f32 %v325, %v362
  %364 = vmatmul.f32.gmra.mxu0 %v290
  %v365 = vpop.f32.mrf.mxu0
  %v366 = vadd.f32 %v328, %v365
  %367 = vmatmul.f32.gmra.mxu0 %v293
  %v368 = vpop.f32.mrf.mxu0
  %v369 = vadd.f32 %v331, %v368
  %370 = vmatmul.f32.gmra.mxu0 %v296
  %v371 = vpop.f32.mrf.mxu0
  %v372 = vadd.f32 %v334, %v371
  %373 = vmatmul.f32.gmra.mxu0 %v299
  %v374 = vpop.f32.mrf.mxu0
  %v375 = vadd.f32 %v337, %v374
  %376 = vmatmul.f32.gmra.mxu0 %v302
  %v377 = vpop.f32.mrf.mxu0
  %v378 = vadd.f32 %v340, %v377
  %379 = vdwg.mxu0
  %v380 = vmax.f32 %v261, %v360
  %v381 = vmax.f32 %v262, %v363
  %v382 = vmax.f32 %v263, %v366
  %v383 = vmax.f32 %v264, %v369
  %v384 = vmax.f32 %v265, %v372
  %v385 = vmax.f32 %v266, %v375
  %v386 = vmax.f32 %v267, %v378
  %s387 = scalar_lea.vmem %s0, 336
  %v388 = vld [vmem:[%s387] sm:$0xff]
  %v389 = vld [vmem:[%s387 + $0x8] sm:$0xff]
  %v390 = vld [vmem:[%s387 + $0x10] sm:$0xff]
  %v391 = vld [vmem:[%s387 + $0x18] sm:$0xff]
  %v392 = vld [vmem:[%s387 + $0x20] sm:$0xff]
  %v393 = vld [vmem:[%s387 + $0x28] sm:$0xff]
  %v394 = vld [vmem:[%s387 + $0x30] sm:$0xff]
  %v395 = vld [vmem:[%s387 + $0x38] sm:$0xff]
  %v396 = vld [vmem:[%s387 + $0x40] sm:$0xff]
  %v397 = vld [vmem:[%s387 + $0x48] sm:$0xff]
  %v398 = vld [vmem:[%s387 + $0x50] sm:$0xff]
  %v399 = vld [vmem:[%s387 + $0x58] sm:$0xff]
  %v400 = vld [vmem:[%s387 + $0x60] sm:$0x3]
  %v401 = vld [vmem:[%s387 + $0x68] sm:$0x3]
  %v403 = vsel %vm47, %v389, 0
  %v406 = vsel %vm47, %v391, 0
  %v409 = vsel %vm47, %v393, 0
  %v412 = vsel %vm47, %v395, 0
  %v415 = vsel %vm47, %v397, 0
  %v418 = vsel %vm47, %v399, 0
  %v421 = vsel %vm47, %v401, 0
  %423 = vmatpush.msra.mxu0 %v43
  %424 = vmatpush.msra.mxu0 %v42
  %425 = vmatpush.msra.mxu0 %v41
  %426 = vmatpush.msra.mxu0 %v40
  %427 = vmatpush.msra.mxu0 %v39
  %428 = vmatpush.msra.mxu0 %v38
  %429 = vmatpush.msra.mxu0 %v37
  %430 = vmatpush.msra.mxu0 %v36
  %431 = vmatpush.msra.mxu0 %v35
  %432 = vmatpush.msra.mxu0 %v34
  %433 = vmatpush.msra.mxu0 %v33
  %434 = vmatpush.msra.mxu0 %v32
  %435 = vmatpush.msra.mxu0 %v31
  %436 = vmatpush.msra.mxu0 %v30
  %437 = vmatpush.msra.mxu0 %v29
  %438 = vmatpush.msra.mxu0 %v28
  %439 = vmatmul.f32.gmra.mxu0 %v388
  %v440 = vpop.f32.mrf.mxu0
  %v441 = vadd.f32 0.0, %v440
  %442 = vmatmul.f32.gmra.mxu0 %v390
  %v443 = vpop.f32.mrf.mxu0
  %v444 = vadd.f32 0.0, %v443
  %445 = vmatmul.f32.gmra.mxu0 %v392
  %v446 = vpop.f32.mrf.mxu0
  %v447 = vadd.f32 0.0, %v446
  %448 = vmatmul.f32.gmra.mxu0 %v394
  %v449 = vpop.f32.mrf.mxu0
  %v450 = vadd.f32 0.0, %v449
  %451 = vmatmul.f32.gmra.mxu0 %v396
  %v452 = vpop.f32.mrf.mxu0
  %v453 = vadd.f32 0.0, %v452
  %454 = vmatmul.f32.gmra.mxu0 %v398
  %v455 = vpop.f32.mrf.mxu0
  %v456 = vadd.f32 0.0, %v455
  %457 = vmatmul.f32.gmra.mxu0 %v400
  %v458 = vpop.f32.mrf.mxu0
  %v459 = vadd.f32 0.0, %v458
  %460 = vdwg.mxu0
  %461 = vmatpush.msra.mxu0 0.0
  %462 = vmatpush.msra.mxu0 0.0
  %463 = vmatpush.msra.mxu0 0.0
  %464 = vmatpush.msra.mxu0 0.0
  %465 = vmatpush.msra.mxu0 0.0
  %466 = vmatpush.msra.mxu0 0.0
  %467 = vmatpush.msra.mxu0 0.0
  %468 = vmatpush.msra.mxu0 0.0
  %469 = vmatpush.msra.mxu0 0.0
  %470 = vmatpush.msra.mxu0 0.0
  %471 = vmatpush.msra.mxu0 0.0
  %472 = vmatpush.msra.mxu0 0.0
  %473 = vmatpush.msra.mxu0 0.0
  %474 = vmatpush.msra.mxu0 %v71
  %475 = vmatpush.msra.mxu0 %v45
  %476 = vmatpush.msra.mxu0 %v44
  %477 = vmatmul.f32.gmra.mxu0 %v403
  %v478 = vpop.f32.mrf.mxu0
  %v479 = vadd.f32 %v441, %v478
  %480 = vmatmul.f32.gmra.mxu0 %v406
  %v481 = vpop.f32.mrf.mxu0
  %v482 = vadd.f32 %v444, %v481
  %483 = vmatmul.f32.gmra.mxu0 %v409
  %v484 = vpop.f32.mrf.mxu0
  %v485 = vadd.f32 %v447, %v484
  %486 = vmatmul.f32.gmra.mxu0 %v412
  %v487 = vpop.f32.mrf.mxu0
  %v488 = vadd.f32 %v450, %v487
  %489 = vmatmul.f32.gmra.mxu0 %v415
  %v490 = vpop.f32.mrf.mxu0
  %v491 = vadd.f32 %v453, %v490
  %492 = vmatmul.f32.gmra.mxu0 %v418
  %v493 = vpop.f32.mrf.mxu0
  %v494 = vadd.f32 %v456, %v493
  %495 = vmatmul.f32.gmra.mxu0 %v421
  %v496 = vpop.f32.mrf.mxu0
  %v497 = vadd.f32 %v459, %v496
  %498 = vdwg.mxu0
  %v499 = vmax.f32 %v380, %v479
  %v500 = vmax.f32 %v381, %v482
  %v501 = vmax.f32 %v382, %v485
  %v502 = vmax.f32 %v383, %v488
  %v503 = vmax.f32 %v384, %v491
  %v504 = vmax.f32 %v385, %v494
  %v505 = vmax.f32 %v386, %v497
  %v506 = vld [vmem:[%s2] sm:$0x1]
  %v508 = vperm.slane %v506, 0
  %v510 = vadd.f32 %v499, %v508
  %v511 = vadd.f32 %v500, %v508
  %v512 = vadd.f32 %v501, %v508
  %v513 = vadd.f32 %v502, %v508
  %v514 = vadd.f32 %v503, %v508
  %v515 = vadd.f32 %v504, %v508
  %v516 = vadd.f32 %v505, %v508
  %v517 = vmax.f32 %v510, 0.0
  %v518 = vmax.f32 %v511, 0.0
  %v519 = vmax.f32 %v512, 0.0
  %v520 = vmax.f32 %v513, 0.0
  %v521 = vmax.f32 %v514, 0.0
  %v522 = vmax.f32 %v515, 0.0
  %v523 = vmax.f32 %v516, 0.0
  %524 = vst [vmem:[%s3] sm:$0xff] %v517
  %525 = vst [vmem:[%s3 + $0x8] sm:$0xff] %v518
  %526 = vst [vmem:[%s3 + $0x10] sm:$0xff] %v519
  %527 = vst [vmem:[%s3 + $0x18] sm:$0xff] %v520
  %528 = vst [vmem:[%s3 + $0x20] sm:$0xff] %v521
  %529 = vst [vmem:[%s3 + $0x28] sm:$0xff] %v522
  %530 = vst [vmem:[%s3 + $0x30] sm:$0x3] %v523
  // Predicated region
  $region14: #{_lambda_.4} parent=0 // pred_check
    _
  $region15: #{_lambda_.4} parent=0 // pred_check_branch
    %532 = sbr.rel (0) target = $region17
  $region16: #{_lambda_.4} parent=0 // pred_region
    _
  $region17: #{_lambda_.4} parent=0 // pred_fallthru
    _
  // Predicated region
  $region18: #{_lambda_.4} parent=0 // pred_check
    _
  $region19: #{_lambda_.4} parent=0 // pred_check_branch
    %534 = sbr.rel (0) target = $region21
  $region20: #{_lambda_.4} parent=0 // pred_region
    _
  $region21: #{_lambda_.4} parent=0 // pred_fallthru
    _

// kernel: _lambda_.5
$region0: #{_lambda_.5}
  #allocation0 [shape = 'u32[]', space=smem, size = 0x4, offset = 0x4, fixed_abs, tag = 'smem constant byte address 0x4 - core index']
  #allocation1 [shape = 'u32[72,128]{1,0:T(1,128)}', space=vmem, size = 0x9000, scoped, tag = 'internal scratch']
  %s0 = inlined_call_operand.vmem [shape: f32[2,400], index: 0, kind: input, shape index: {}]
  %s1 = inlined_call_operand.vmem [shape: f32[400,128], index: 1, kind: input, shape index: {}]
  %s2 = inlined_call_operand.vmem [shape: f32[1,128], index: 2, kind: input, shape index: {}]
  %s3 = inlined_call_operand.vmem [shape: f32[128,128], index: 3, kind: input, shape index: {}]
  %s4 = inlined_call_operand.vmem [shape: f32[1,128], index: 4, kind: input, shape index: {}]
  %s5 = inlined_call_operand.vmem [shape: f32[128,128], index: 5, kind: input, shape index: {}]
  %s6 = inlined_call_operand.vmem [shape: f32[1,128], index: 6, kind: input, shape index: {}]
  %s7 = inlined_call_operand.vmem [shape: f32[2,128], index: 7, kind: output, shape index: {}]
  %s8 = sld [smem:[#allocation0]]
  $region38: #{_lambda_.5} parent=0
    _
  %s10 = ssub.s32 1, %s8
  %s11 = scalar_select 0, %s10, %s8
  // Predicated region
  $region2: #{_lambda_.5} parent=0 // pred_check
    _
  $region3: #{_lambda_.5} parent=0 // pred_check_branch
    %13 = sbr.rel (0) target = $region5
  $region4: #{_lambda_.5} parent=0 // pred_region
    _
  $region5: #{_lambda_.5} parent=0 // pred_fallthru
    _
  // Predicated region
  $region6: #{_lambda_.5} parent=0 // pred_check
    _
  $region7: #{_lambda_.5} parent=0 // pred_check_branch
    %15 = sbr.rel (0) target = $region9
  $region8: #{_lambda_.5} parent=0 // pred_region
    _
  $region9: #{_lambda_.5} parent=0 // pred_fallthru
    _
  // Predicated region
  $region10: #{_lambda_.5} parent=0 // pred_check
    _
  $region11: #{_lambda_.5} parent=0 // pred_check_branch
    %17 = sbr.rel (0) target = $region13
  $region12: #{_lambda_.5} parent=0 // pred_region
    _
  $region13: #{_lambda_.5} parent=0 // pred_fallthru
    _
  // Predicated region
  $region14: #{_lambda_.5} parent=0 // pred_check
    _
  $region15: #{_lambda_.5} parent=0 // pred_check_branch
    %19 = sbr.rel (0) target = $region17
  $region16: #{_lambda_.5} parent=0 // pred_region
    _
  $region17: #{_lambda_.5} parent=0 // pred_fallthru
    _
  // Predicated region
  $region18: #{_lambda_.5} parent=0 // pred_check
    _
  $region19: #{_lambda_.5} parent=0 // pred_check_branch
    %21 = sbr.rel (0) target = $region21
  $region20: #{_lambda_.5} parent=0 // pred_region
    _
  $region21: #{_lambda_.5} parent=0 // pred_fallthru
    _
  // Predicated region
  $region22: #{_lambda_.5} parent=0 // pred_check
    _
  $region23: #{_lambda_.5} parent=0 // pred_check_branch
    %23 = sbr.rel (0) target = $region25
  $region24: #{_lambda_.5} parent=0 // pred_region
    _
  $region25: #{_lambda_.5} parent=0 // pred_fallthru
    _
  // Predicated region
  $region26: #{_lambda_.5} parent=0 // pred_check
    _
  $region27: #{_lambda_.5} parent=0 // pred_check_branch
    %25 = sbr.rel (0) target = $region29
  $region28: #{_lambda_.5} parent=0 // pred_region
    _
  $region29: #{_lambda_.5} parent=0 // pred_fallthru
    _
  %v26 = vld [vmem:[%s0] sm:$0xff]
  %v27 = vld [vmem:[%s1] sm:$0xff]
  %v28 = vld [vmem:[%s1 + $0x8] sm:$0xff]
  %v29 = vld [vmem:[%s1 + $0x10] sm:$0xff]
  %v30 = vld [vmem:[%s1 + $0x18] sm:$0xff]
  %v31 = vld [vmem:[%s1 + $0x20] sm:$0xff]
  %v32 = vld [vmem:[%s1 + $0x28] sm:$0xff]
  %v33 = vld [vmem:[%s1 + $0x30] sm:$0xff]
  %v34 = vld [vmem:[%s1 + $0x38] sm:$0xff]
  %v35 = vld [vmem:[%s1 + $0x40] sm:$0xff]
  %v36 = vld [vmem:[%s1 + $0x48] sm:$0xff]
  %v37 = vld [vmem:[%s1 + $0x50] sm:$0xff]
  %v38 = vld [vmem:[%s1 + $0x58] sm:$0xff]
  %v39 = vld [vmem:[%s1 + $0x60] sm:$0xff]
  %v40 = vld [vmem:[%s1 + $0x68] sm:$0xff]
  %v41 = vld [vmem:[%s1 + $0x70] sm:$0xff]
  %v42 = vld [vmem:[%s1 + $0x78] sm:$0xff]
  %v43 = vld [vmem:[%s1 + $0x80] sm:$0xff]
  %v44 = vld [vmem:[%s1 + $0x88] sm:$0xff]
  %v45 = vld [vmem:[%s1 + $0x90] sm:$0xff]
  %v46 = vld [vmem:[%s1 + $0x98] sm:$0xff]
  %v47 = vld [vmem:[%s1 + $0xa0] sm:$0xff]
  %v48 = vld [vmem:[%s1 + $0xa8] sm:$0xff]
  %v49 = vld [vmem:[%s1 + $0xb0] sm:$0xff]
  %v50 = vld [vmem:[%s1 + $0xb8] sm:$0xff]
  %v51 = vld [vmem:[%s1 + $0xc0] sm:$0xff]
  %v52 = vld [vmem:[%s1 + $0xc8] sm:$0xff]
  %v53 = vld [vmem:[%s1 + $0xd0] sm:$0xff]
  %v54 = vld [vmem:[%s1 + $0xd8] sm:$0xff]
  %v55 = vld [vmem:[%s1 + $0xe0] sm:$0xff]
  %v56 = vld [vmem:[%s1 + $0xe8] sm:$0xff]
  %v57 = vld [vmem:[%s1 + $0xf0] sm:$0xff]
  %v58 = vld [vmem:[%s1 + $0xf8] sm:$0xff]
  %v59 = vld [vmem:[%s1 + $0x100] sm:$0xff]
  %v60 = vld [vmem:[%s1 + $0x108] sm:$0xff]
  %v61 = vld [vmem:[%s1 + $0x110] sm:$0xff]
  %v62 = vld [vmem:[%s1 + $0x118] sm:$0xff]
  %v63 = vld [vmem:[%s1 + $0x120] sm:$0xff]
  %v64 = vld [vmem:[%s1 + $0x128] sm:$0xff]
  %v65 = vld [vmem:[%s1 + $0x130] sm:$0xff]
  %v66 = vld [vmem:[%s1 + $0x138] sm:$0xff]
  %v67 = vld [vmem:[%s1 + $0x140] sm:$0xff]
  %v68 = vld [vmem:[%s1 + $0x148] sm:$0xff]
  %v69 = vld [vmem:[%s1 + $0x150] sm:$0xff]
  %v70 = vld [vmem:[%s1 + $0x158] sm:$0xff]
  %v71 = vld [vmem:[%s1 + $0x160] sm:$0xff]
  %v72 = vld [vmem:[%s1 + $0x168] sm:$0xff]
  %v73 = vld [vmem:[%s1 + $0x170] sm:$0xff]
  %v74 = vld [vmem:[%s1 + $0x178] sm:$0xff]
  %v75 = vld [vmem:[%s1 + $0x180] sm:$0xff]
  %v76 = vld [vmem:[%s1 + $0x188] sm:$0xff]
  %v77 = vld [vmem:[%s2] sm:$0x1]
  %v79 = vperm.slane %v77, 0
  %82 = vst [vmem:[#allocation1] ss:$4 sm:$0xff] %v26
  %v83 = vld.sshfl [vmem:[#allocation1] sm:$0xff pattern:$0x73625140]
  %v84 = vld.sshfl [vmem:[#allocation1 + $0x8] sm:$0xff pattern:$0x73625140]
  %v85 = vld.sshfl [vmem:[#allocation1 + $0x10] sm:$0xff pattern:$0x73625140]
  %v86 = vld.sshfl [vmem:[#allocation1 + $0x18] sm:$0xff pattern:$0x73625140]
  %vm90 = vcmask 130048
  %v91 = vsel %vm90, %v86, 0
  %93 = vmatpush.msra.mxu0 %v42
  %94 = vmatpush.msra.mxu0 %v41
  %95 = vmatpush.msra.mxu0 %v40
  %96 = vmatpush.msra.mxu0 %v39
  %97 = vmatpush.msra.mxu0 %v38
  %98 = vmatpush.msra.mxu0 %v37
  %99 = vmatpush.msra.mxu0 %v36
  %100 = vmatpush.msra.mxu0 %v35
  %101 = vmatpush.msra.mxu0 %v34
  %102 = vmatpush.msra.mxu0 %v33
  %103 = vmatpush.msra.mxu0 %v32
  %104 = vmatpush.msra.mxu0 %v31
  %105 = vmatpush.msra.mxu0 %v30
  %106 = vmatpush.msra.mxu0 %v29
  %107 = vmatpush.msra.mxu0 %v28
  %108 = vmatpush.msra.mxu0 %v27
  %109 = vmatmul.f32.gmra.mxu0 %v83
  %v110 = vpop.f32.mrf.mxu0
  %v111 = vadd.f32 %v79, %v110
  %112 = vdwg.mxu0
  %113 = vmatpush.msra.mxu0 %v58
  %114 = vmatpush.msra.mxu0 %v57
  %115 = vmatpush.msra.mxu0 %v56
  %116 = vmatpush.msra.mxu0 %v55
  %117 = vmatpush.msra.mxu0 %v54
  %118 = vmatpush.msra.mxu0 %v53
  %119 = vmatpush.msra.mxu0 %v52
  %120 = vmatpush.msra.mxu0 %v51
  %121 = vmatpush.msra.mxu0 %v50
  %122 = vmatpush.msra.mxu0 %v49
  %123 = vmatpush.msra.mxu0 %v48
  %124 = vmatpush.msra.mxu0 %v47
  %125 = vmatpush.msra.mxu0 %v46
  %126 = vmatpush.msra.mxu0 %v45
  %127 = vmatpush.msra.mxu0 %v44
  %128 = vmatpush.msra.mxu0 %v43
  %129 = vmatmul.f32.gmra.mxu0 %v84
  %v130 = vpop.f32.mrf.mxu0
  %v131 = vadd.f32 %v111, %v130
  %132 = vdwg.mxu0
  %133 = vmatpush.msra.mxu0 %v74
  %134 = vmatpush.msra.mxu0 %v73
  %135 = vmatpush.msra.mxu0 %v72
  %136 = vmatpush.msra.mxu0 %v71
  %137 = vmatpush.msra.mxu0 %v70
  %138 = vmatpush.msra.mxu0 %v69
  %139 = vmatpush.msra.mxu0 %v68
  %140 = vmatpush.msra.mxu0 %v67
  %141 = vmatpush.msra.mxu0 %v66
  %142 = vmatpush.msra.mxu0 %v65
  %143 = vmatpush.msra.mxu0 %v64
  %144 = vmatpush.msra.mxu0 %v63
  %145 = vmatpush.msra.mxu0 %v62
  %146 = vmatpush.msra.mxu0 %v61
  %147 = vmatpush.msra.mxu0 %v60
  %148 = vmatpush.msra.mxu0 %v59
  %149 = vmatmul.f32.gmra.mxu0 %v85
  %v150 = vpop.f32.mrf.mxu0
  %v151 = vadd.f32 %v131, %v150
  %152 = vdwg.mxu0
  %153 = vmatpush.msra.mxu0 0.0
  %154 = vmatpush.msra.mxu0 0.0
  %155 = vmatpush.msra.mxu0 0.0
  %156 = vmatpush.msra.mxu0 0.0
  %157 = vmatpush.msra.mxu0 0.0
  %158 = vmatpush.msra.mxu0 0.0
  %159 = vmatpush.msra.mxu0 0.0
  %160 = vmatpush.msra.mxu0 0.0
  %161 = vmatpush.msra.mxu0 0.0
  %162 = vmatpush.msra.mxu0 0.0
  %163 = vmatpush.msra.mxu0 0.0
  %164 = vmatpush.msra.mxu0 0.0
  %165 = vmatpush.msra.mxu0 0.0
  %166 = vmatpush.msra.mxu0 0.0
  %167 = vmatpush.msra.mxu0 %v76
  %168 = vmatpush.msra.mxu0 %v75
  %169 = vmatmul.f32.gmra.mxu0 %v91
  %v170 = vpop.f32.mrf.mxu0
  %v171 = vadd.f32 %v151, %v170
  %172 = vdwg.mxu0
  %v173 = vmax.f32 %v171, 0.0
  %v174 = vld [vmem:[%s3] sm:$0xff]
  %v175 = vld [vmem:[%s3 + $0x8] sm:$0xff]
  %v176 = vld [vmem:[%s3 + $0x10] sm:$0xff]
  %v177 = vld [vmem:[%s3 + $0x18] sm:$0xff]
  %v178 = vld [vmem:[%s3 + $0x20] sm:$0xff]
  %v179 = vld [vmem:[%s3 + $0x28] sm:$0xff]
  %v180 = vld [vmem:[%s3 + $0x30] sm:$0xff]
  %v181 = vld [vmem:[%s3 + $0x38] sm:$0xff]
  %v182 = vld [vmem:[%s3 + $0x40] sm:$0xff]
  %v183 = vld [vmem:[%s3 + $0x48] sm:$0xff]
  %v184 = vld [vmem:[%s3 + $0x50] sm:$0xff]
  %v185 = vld [vmem:[%s3 + $0x58] sm:$0xff]
  %v186 = vld [vmem:[%s3 + $0x60] sm:$0xff]
  %v187 = vld [vmem:[%s3 + $0x68] sm:$0xff]
  %v188 = vld [vmem:[%s3 + $0x70] sm:$0xff]
  %v189 = vld [vmem:[%s3 + $0x78] sm:$0xff]
  %v190 = vld [vmem:[%s4] sm:$0x1]
  %v192 = vperm.slane %v190, 0
  %194 = vmatpush.msra.mxu0 %v189
  %195 = vmatpush.msra.mxu0 %v188
  %196 = vmatpush.msra.mxu0 %v187
  %197 = vmatpush.msra.mxu0 %v186
  %198 = vmatpush.msra.mxu0 %v185
  %199 = vmatpush.msra.mxu0 %v184
  %200 = vmatpush.msra.mxu0 %v183
  %201 = vmatpush.msra.mxu0 %v182
  %202 = vmatpush.msra.mxu0 %v181
  %203 = vmatpush.msra.mxu0 %v180
  %204 = vmatpush.msra.mxu0 %v179
  %205 = vmatpush.msra.mxu0 %v178
  %206 = vmatpush.msra.mxu0 %v177
  %207 = vmatpush.msra.mxu0 %v176
  %208 = vmatpush.msra.mxu0 %v175
  %209 = vmatpush.msra.mxu0 %v174
  %210 = vmatmul.f32.gmra.mxu0 %v173
  %v211 = vpop.f32.mrf.mxu0
  %v212 = vadd.f32 %v192, %v211
  %213 = vdwg.mxu0
  %v214 = vmax.f32 %v212, 0.0
  %v215 = vld [vmem:[%s5] sm:$0xff]
  %v216 = vld [vmem:[%s5 + $0x8] sm:$0xff]
  %v217 = vld [vmem:[%s5 + $0x10] sm:$0xff]
  %v218 = vld [vmem:[%s5 + $0x18] sm:$0xff]
  %v219 = vld [vmem:[%s5 + $0x20] sm:$0xff]
  %v220 = vld [vmem:[%s5 + $0x28] sm:$0xff]
  %v221 = vld [vmem:[%s5 + $0x30] sm:$0xff]
  %v222 = vld [vmem:[%s5 + $0x38] sm:$0xff]
  %v223 = vld [vmem:[%s5 + $0x40] sm:$0xff]
  %v224 = vld [vmem:[%s5 + $0x48] sm:$0xff]
  %v225 = vld [vmem:[%s5 + $0x50] sm:$0xff]
  %v226 = vld [vmem:[%s5 + $0x58] sm:$0xff]
  %v227 = vld [vmem:[%s5 + $0x60] sm:$0xff]
  %v228 = vld [vmem:[%s5 + $0x68] sm:$0xff]
  %v229 = vld [vmem:[%s5 + $0x70] sm:$0xff]
  %v230 = vld [vmem:[%s5 + $0x78] sm:$0xff]
  %v231 = vld [vmem:[%s6] sm:$0x1]
  %v233 = vperm.slane %v231, 0
  %235 = vmatpush.msra.mxu0 %v230
  %236 = vmatpush.msra.mxu0 %v229
  %237 = vmatpush.msra.mxu0 %v228
  %238 = vmatpush.msra.mxu0 %v227
  %239 = vmatpush.msra.mxu0 %v226
  %240 = vmatpush.msra.mxu0 %v225
  %241 = vmatpush.msra.mxu0 %v224
  %242 = vmatpush.msra.mxu0 %v223
  %243 = vmatpush.msra.mxu0 %v222
  %244 = vmatpush.msra.mxu0 %v221
  %245 = vmatpush.msra.mxu0 %v220
  %246 = vmatpush.msra.mxu0 %v219
  %247 = vmatpush.msra.mxu0 %v218
  %248 = vmatpush.msra.mxu0 %v217
  %249 = vmatpush.msra.mxu0 %v216
  %250 = vmatpush.msra.mxu0 %v215
  %251 = vmatmul.f32.gmra.mxu0 %v214
  %v252 = vpop.f32.mrf.mxu0
  %v253 = vadd.f32 %v233, %v252
  %254 = vdwg.mxu0
  %v255 = vtanh.pop %v253
  %256 = vst [vmem:[%s7] sm:$0x3] %v255
  // Predicated region
  $region30: #{_lambda_.5} parent=0 // pred_check
    _
  $region31: #{_lambda_.5} parent=0 // pred_check_branch
    %258 = sbr.rel (0) target = $region33
  $region32: #{_lambda_.5} parent=0 // pred_region
    _
  $region33: #{_lambda_.5} parent=0 // pred_fallthru
    _
  // Predicated region
  $region34: #{_lambda_.5} parent=0 // pred_check
    _
  $region35: #{_lambda_.5} parent=0 // pred_check_branch
    %260 = sbr.rel (0) target = $region37
  $region36: #{_lambda_.5} parent=0 // pred_region
    _
  $region37: #{_lambda_.5} parent=0 // pred_fallthru
    _

</llo_original>
